<compile_context>
chip_gen: v5e
topology: v5e:2x2
jax: 0.10.0
libtpu: 0.0.40
codegen_flags: <defaults>
</compile_context>

<pallas_src>
import functools

import jax
import jax.numpy as jnp
import numpy as np
from jax.experimental import pallas as pl
from jax.experimental.pallas import tpu as pltpu

EPS = 1e-5
LANE = 128
_VMEM_LIMIT = 48 * 1024 * 1024        # safe on v7x (64 MiB physical) as well
_BLOCK_BUDGET = 16 * 1024 * 1024      # per-grid-step working-set budget
_MAX_BB = 8                           # cap in-kernel unrolling


def _round_up(x, m):
    return (x + m - 1) // m * m


def _const_spec(shape):
    nd = len(shape)
    return pl.BlockSpec(tuple(shape), lambda n: (0,) * nd)


def _nbytes(x):
    return int(np.prod(x.shape)) * jnp.dtype(x.dtype).itemsize


def _cost(flops, operands):
    return pl.CostEstimate(flops=int(flops), transcendentals=0,
                           bytes_accessed=int(sum(_nbytes(o) for o in operands)))


# ---------------------------------------------------------------------------
# Kernels
# ---------------------------------------------------------------------------
def _conv1_kernel(*refs, stride, Ho, Wo, ph_rows, bb, has_shortcut):
    """conv1 (3x3, pad=1, stride s) [+ fused 1x1 projection shortcut] + stats.

    inputs : x  (bb, s*s*ph_rows, pW, Cin_p) bf16  phase-decomposed padded x
             wa (3*Cin_p, Cout_p)            bf16  kh=0 row (kw taps fused in K)
             wb (3*Cin_p, Cout_p[+Cout_p])   bf16  kh=1 row, shortcut fused in N
             wc (3*Cin_p, Cout_p)            bf16  kh=2 row
    outputs: y1  (bb, Ho*Wo, Cout_p) bf16          raw conv1
             [ysc (bb, Ho*Wo, Cout_p) bf16]        raw shortcut conv
             st  (1, rows, Cout_p) f32             per-step partial sum/sumsq
    """
    if has_shortcut:
        x_ref, wa_ref, wb_ref, wc_ref, y1_ref, ysc_ref, st_ref = refs
    else:
        x_ref, wa_ref, wb_ref, wc_ref, y1_ref, st_ref = refs

    s = stride
    m1 = Ho * Wo
    cin = x_ref.shape[-1]
    cout = y1_ref.shape[-1]

    def fused_tap(b, kh):
        parts = []
        for kw in range(3):
            # Tap (kh, kw) of a stride-s conv == contiguous *static* slice of
            # phase (kh % s, kw % s) at offset (kh // s, kw // s).
            r0 = ((kh % s) * s + (kw % s)) * ph_rows + kh // s
            c0 = kw // s
            parts.append(x_ref[b, r0:r0 + Ho, c0:c0 + Wo, :].reshape(m1, cin))
        return jnp.concatenate(parts, axis=-1)              # (m1, 3*cin) bf16

    taps = [jnp.concatenate([fused_tap(b, kh) for b in range(bb)], axis=0)
            for kh in range(3)]                              # (bb*m1, 3*cin)

    acc = jnp.dot(taps[0], wa_ref[...], preferred_element_type=jnp.float32)
    r1 = jnp.dot(taps[1], wb_ref[...], preferred_element_type=jnp.float32)
    acc = acc + r1[:, :cout]
    acc = acc + jnp.dot(taps[2], wc_ref[...], preferred_element_type=jnp.float32)

    y1_ref[...] = acc.reshape(bb, m1, cout).astype(y1_ref.dtype)
    # TODO(synk): one-pass sum / sum-of-squares in f32; use a compensated or
    # two-pass scheme if |mean| >> std ever becomes an issue.
    rows = [jnp.sum(acc, axis=0, keepdims=True),
            jnp.sum(acc * acc, axis=0, keepdims=True)]
    if has_shortcut:
        ysc = r1[:, cout:]
        ysc_ref[...] = ysc.reshape(bb, m1, cout).astype(ysc_ref.dtype)
        rows += [jnp.sum(ysc, axis=0, keepdims=True),
                 jnp.sum(ysc * ysc, axis=0, keepdims=True)]
    st_ref[0] = jnp.concatenate(rows, axis=0)


def _bn_relu_conv2_kernel(y1_ref, st1_ref, g1_ref, b1_ref, w2_ref,
                          y2_ref, st2_ref, buf, *, Ho, Wo, bb, m_total):
    """bn1 + relu (in VMEM) -> conv2 (3x3, pad=1, stride 1) + partial stats."""
    m1 = Ho * Wo
    c = y1_ref.shape[-1]

    inv_m = 1.0 / m_total
    mean = st1_ref[0:1, :] * inv_m
    var = st1_ref[1:2, :] * inv_m - mean * mean
    scale = jax.lax.rsqrt(var + EPS) * g1_ref[...]
    shift = b1_ref[...] - mean * scale

    # Re-zero the halo buffer every step: cheap, and correct even when the
    # ("parallel") batch axis is sharded across TensorCores and a core never
    # runs step 0.
    buf[...] = jnp.zeros_like(buf)
    for b in range(bb):
        a1 = jnp.maximum(y1_ref[b].astype(jnp.float32) * scale + shift, 0.0)
        buf[b, 1:Ho + 1, 1:Wo + 1, :] = (
            a1.astype(jnp.bfloat16).reshape(Ho, Wo, c))

    def fused_tap(b, kh):
        parts = [buf[b, kh:kh + Ho, kw:kw + Wo, :].reshape(m1, c)
                 for kw in range(3)]
        return jnp.concatenate(parts, axis=-1)               # (m1, 3*c) bf16

    acc = None
    for kh in range(3):
        t = jnp.concatenate([fused_tap(b, kh) for b in range(bb)], axis=0)
        d = jnp.dot(t, w2_ref[kh], preferred_element_type=jnp.float32)
        acc = d if acc is None else acc + d

    y2_ref[...] = acc.reshape(bb, m1, c).astype(y2_ref.dtype)
    st2_ref[0] = jnp.concatenate(
        [jnp.sum(acc, axis=0, keepdims=True),
         jnp.sum(acc * acc, axis=0, keepdims=True)], axis=0)


def _bn_scale_shift(st_ref, row, g_ref, b_ref, inv_m):
    mean = st_ref[row:row + 1, :] * inv_m
    var = st_ref[row + 1:row + 2, :] * inv_m - mean * mean
    scale = jax.lax.rsqrt(var + EPS) * g_ref[...]
    shift = b_ref[...] - mean * scale
    return scale, shift


def _bn_add_relu_kernel(*refs, m_total, has_shortcut):
    """Final pass: bn2 (+ shortcut bn) + residual add + relu (element-wise)."""
    if has_shortcut:
        (y2_ref, st2_ref, g2_ref, b2_ref,
         ysc_ref, st1_ref, gs_ref, bs_ref, o_ref) = refs
    else:
        y2_ref, st2_ref, g2_ref, b2_ref, xid_ref, o_ref = refs

    inv_m = 1.0 / m_total
    sc2, sh2 = _bn_scale_shift(st2_ref, 0, g2_ref, b2_ref, inv_m)
    out = y2_ref[...].astype(jnp.float32) * sc2 + sh2
    if has_shortcut:
        scs, shs = _bn_scale_shift(st1_ref, 2, gs_ref, bs_ref, inv_m)
        out = out + ysc_ref[...].astype(jnp.float32) * scs + shs
    else:
        out = out + xid_ref[...]
    o_ref[...] = jnp.maximum(out, 0.0)


# ---------------------------------------------------------------------------
# Wrapper-side prep (layout plumbing only)
# ---------------------------------------------------------------------------
def _prep_w3x3_fused(w_oihw, cin_p, cout_p):
    """OIHW 3x3 -> (3, 3*cin_p, cout_p) bf16: per kh row, kw taps fused in K."""
    o, c, _, _ = w_oihw.shape
    w = jnp.transpose(w_oihw, (2, 3, 1, 0)).reshape(9, c, o)
    w = jnp.pad(w, ((0, 0), (0, cin_p - c), (0, cout_p - o)))
    return w.reshape(3, 3 * cin_p, cout_p).astype(jnp.bfloat16)


def _prep_w1x1(w_oihw, cin_p, cout_p):
    o, c, _, _ = w_oihw.shape
    w = jnp.transpose(w_oihw, (2, 3, 1, 0)).reshape(c, o)
    w = jnp.pad(w, ((0, cin_p - c), (0, cout_p - o)))
    return w.astype(jnp.bfloat16)


def _prep_vec(v, c_p):
    # Gamma/beta are zero-padded: padded channel lanes get scale=shift=0, so
    # they stay exactly zero through BN / relu / conv2.
    return jnp.pad(v.astype(jnp.float32).reshape(1, -1),
                   ((0, 0), (0, c_p - v.shape[0])))


def _phase_decompose(x_sp, s):
    """(N, Hp, Wp, C) padded input -> (N, s*s*pH, pW, C); no byte expansion."""
    n, hp, wp, c = x_sp.shape
    ph, pw = -(-hp // s), -(-wp // s)
    x_sp = jnp.pad(x_sp, ((0, 0), (0, ph * s - hp), (0, pw * s - wp), (0, 0)))
    phases = [x_sp[:, p::s, q::s, :] for p in range(s) for q in range(s)]
    return jnp.stack(phases, axis=1).reshape(n, s * s * ph, pw, c), ph, pw


def _pick_batch_block(n, per_image_bytes, budget, max_bb=_MAX_BB):
    bb = 1
    for d in range(1, n + 1):
        if n % d == 0 and d <= max_bb and d * per_image_bytes <= budget:
            bb = d
    return bb


# ---------------------------------------------------------------------------
# Public forward
# ---------------------------------------------------------------------------
def basic_block_forward(x_nchw, params, stride):
    """Matches BasicBlock.forward (PyTorch, training-mode BN); NCHW in/out."""
    s = stride
    x = jnp.transpose(x_nchw, (0, 2, 3, 1)).astype(jnp.float32)     # NHWC
    N, H, W, cin = x.shape
    planes = params["w1"].shape[0]
    cin_p = _round_up(cin, LANE)
    cout_p = _round_up(planes, LANE)
    Ho = (H - 1) // s + 1
    Wo = (W - 1) // s + 1
    m1 = Ho * Wo
    m_total = N * m1
    has_shortcut = (s != 1) or (cin != planes)
    f32, bf16 = jnp.float32, jnp.bfloat16

    # channel pad -> spatial pad (conv padding=1) -> phase split (stride taps)
    xc = jnp.pad(x, ((0, 0), (0, 0), (0, 0), (0, cin_p - cin)))
    x_ph, ph_rows, pW = _phase_decompose(
        jnp.pad(xc, ((0, 0), (1, 1), (1, 1), (0, 0))), s)
    x_ph = x_ph.astype(bf16)            # bf16 input: half the conv1 DMA bytes

    wf1 = _prep_w3x3_fused(params["w1"], cin_p, cout_p)    # (3, 3cin_p, cout_p)
    wf2 = _prep_w3x3_fused(params["w2"], cout_p, cout_p)   # (3, 3cout_p, cout_p)
    w1a, w1b, w1c = wf1[0], wf1[1], wf1[2]
    g1, b1 = _prep_vec(params["g1"], cout_p), _prep_vec(params["b1"], cout_p)
    g2, b2 = _prep_vec(params["g2"], cout_p), _prep_vec(params["b2"], cout_p)
    if has_shortcut:
        # Fuse the 1x1 projection weight onto the centre (kh=1, kw=1) tap
        # along the output-channel (N) dim: one MXU pass yields both conv1's
        # kh=1 contribution and the shortcut conv.
        ws = _prep_w1x1(params["ws"], cin_p, cout_p)
        sc_block = jnp.zeros((3 * cin_p, cout_p), bf16)
        sc_block = sc_block.at[cin_p:2 * cin_p].set(ws)
        w1b = jnp.concatenate([w1b, sc_block], axis=1)     # (3cin_p, 2cout_p)
        gs, bs = _prep_vec(params["gs"], cout_p), _prep_vec(params["bs"], cout_p)
    cout_b = w1b.shape[1]
    nrows1 = 4 if has_shortcut else 2

    # ---- batch blocking: largest divisor of N that fits the VMEM budget ----
    k1_per_img = (x_ph.shape[1] * x_ph.shape[2] * cin_p * 2
                  + 9 * m1 * cin_p * 2 + m1 * (cout_p + cout_b) * 4
                  + (2 if has_shortcut else 1) * m1 * cout_p * 2 * 2)
    k2_per_img = (2 * m1 * cout_p * 2 * 2 + (Ho + 2) * (Wo + 2) * cout_p * 2
                  + 9 * m1 * cout_p * 2 + m1 * cout_p * 4)
    bb = _pick_batch_block(N, max(k1_per_img, k2_per_img), _BLOCK_BUDGET)
    G = N // bb

    def _act_spec():
        return pl.BlockSpec((bb, m1, cout_p), lambda n: (n, 0, 0))

    # ------------------ kernel 1: conv1 (+ shortcut conv) + stats -----------
    k1_inputs = [x_ph, w1a, w1b, w1c]
    k1_in_specs = [
        pl.BlockSpec((bb, x_ph.shape[1], pW, cin_p), lambda n: (n, 0, 0, 0)),
        _const_spec(w1a.shape), _const_spec(w1b.shape), _const_spec(w1c.shape),
    ]
    k1_out_shape = [jax.ShapeDtypeStruct((N, m1, cout_p), bf16)]
    k1_out_specs = [_act_spec()]
    if has_shortcut:
        k1_out_shape.append(jax.ShapeDtypeStruct((N, m1, cout_p), bf16))
        k1_out_specs.append(_act_spec())
    k1_out_shape.append(jax.ShapeDtypeStruct((G, nrows1, cout_p), f32))
    k1_out_specs.append(pl.BlockSpec((1, nrows1, cout_p), lambda n: (n, 0, 0)))

    k1 = pl.pallas_call(
        functools.partial(_conv1_kernel, stride=s, Ho=Ho, Wo=Wo,
                          ph_rows=ph_rows, bb=bb, has_shortcut=has_shortcut),
        grid=(G,),
        in_specs=k1_in_specs,
        out_specs=tuple(k1_out_specs),
        out_shape=tuple(k1_out_shape),
        compiler_params=pltpu.CompilerParams(
            dimension_semantics=("parallel",),
            vmem_limit_bytes=_VMEM_LIMIT),
        cost_estimate=_cost(
            2 * m_total * (9 + (1 if has_shortcut else 0)) * cin_p * cout_p,
            k1_inputs + k1_out_shape),
    )(*k1_inputs)
    if has_shortcut:
        y1, ysc, st1p = k1
    else:
        y1, st1p = k1
        ysc = None
    st1 = jnp.sum(st1p, axis=0)                        # (nrows1, cout_p) f32

    # ------------------ kernel 2: bn1 + relu -> conv2 + stats ---------------
    k2_out_shape = (jax.ShapeDtypeStruct((N, m1, cout_p), bf16),
                    jax.ShapeDtypeStruct((G, 2, cout_p), f32))
    y2, st2p = pl.pallas_call(
        functools.partial(_bn_relu_conv2_kernel, Ho=Ho, Wo=Wo, bb=bb,
                          m_total=m_total),
        grid=(G,),
        in_specs=[_act_spec(), _const_spec((nrows1, cout_p)),
                  _const_spec((1, cout_p)), _const_spec((1, cout_p)),
                  _const_spec(wf2.shape)],
        out_specs=(_act_spec(),
                   pl.BlockSpec((1, 2, cout_p), lambda n: (n, 0, 0))),
        out_shape=k2_out_shape,
        scratch_shapes=[pltpu.VMEM((bb, Ho + 2, Wo + 2, cout_p), bf16)],
        compiler_params=pltpu.CompilerParams(
            dimension_semantics=("parallel",),
            vmem_limit_bytes=_VMEM_LIMIT),
        cost_estimate=_cost(2 * m_total * 9 * cout_p * cout_p,
                            [y1, st1, g1, b1, wf2] + list(k2_out_shape)),
    )(y1, st1, g1, b1, wf2)
    st2 = jnp.sum(st2p, axis=0)                        # (2, cout_p) f32

    # ------------------ kernel 3: bn2 (+ shortcut bn) + add + relu ----------
    if has_shortcut:
        k3_inputs = [y2, st2, g2, b2, ysc, st1, gs, bs]
        k3_in_specs = [_act_spec(), _const_spec((2, cout_p)),
                       _const_spec((1, cout_p)), _const_spec((1, cout_p)),
                       _act_spec(), _const_spec((nrows1, cout_p)),
                       _const_spec((1, cout_p)), _const_spec((1, cout_p))]
    else:
        xid = xc.reshape(N, H * W, cin_p)          # identity: cin_p == cout_p
        k3_inputs = [y2, st2, g2, b2, xid]
        k3_in_specs = [_act_spec(), _const_spec((2, cout_p)),
                       _const_spec((1, cout_p)), _const_spec((1, cout_p)),
                       _act_spec()]
    k3_out_shape = jax.ShapeDtypeStruct((N, m1, cout_p), f32)
    out = pl.pallas_call(
        functools.partial(_bn_add_relu_kernel, m_total=m_total,
                          has_shortcut=has_shortcut),
        grid=(G,),
        in_specs=k3_in_specs,
        out_specs=_act_spec(),
        out_shape=k3_out_shape,
        compiler_params=pltpu.CompilerParams(
            dimension_semantics=("parallel",),
            vmem_limit_bytes=_VMEM_LIMIT),
        cost_estimate=_cost(12 * m_total * cout_p, k3_inputs + [k3_out_shape]),
    )(*k3_inputs)

    # TODO(synk): when chaining BasicBlocks, keep the padded lane-dense
    # (N, Ho*Wo, cout_p) layout between blocks instead of slice + transpose.
    out = out.reshape(N, Ho, Wo, cout_p)[..., :planes]
    return jnp.transpose(out, (0, 3, 1, 2))


# ---------------------------------------------------------------------------
# Pure-JAX references (for correctness checks)
# ---------------------------------------------------------------------------
def _bn_train_ref(y_nchw, gamma, beta):
    mean = jnp.mean(y_nchw, axis=(0, 2, 3), keepdims=True)
    var = jnp.mean(jnp.square(y_nchw - mean), axis=(0, 2, 3), keepdims=True)
    return ((y_nchw - mean) * jax.lax.rsqrt(var + EPS)
            * gamma.reshape(1, -1, 1, 1) + beta.reshape(1, -1, 1, 1))


def reference_forward(x, params, stride, operand_dtype=jnp.float32):
    dn = ("NCHW", "OIHW", "NCHW")

    def conv(v, w, s, pad):
        return jax.lax.conv_general_dilated(
            v.astype(operand_dtype), w.astype(operand_dtype), (s, s), pad,
            dimension_numbers=dn, preferred_element_type=jnp.float32,
            precision=jax.lax.Precision.HIGHEST)

    out = jax.nn.relu(_bn_train_ref(
        conv(x, params["w1"], stride, [(1, 1), (1, 1)]),
        params["g1"], params["b1"]))
    out = _bn_train_ref(conv(out, params["w2"], 1, [(1, 1), (1, 1)]),
                        params["g2"], params["b2"])
    if "ws" in params:
        sc = _bn_train_ref(conv(x, params["ws"], stride, [(0, 0), (0, 0)]),
                           params["gs"], params["bs"])
    else:
        sc = x
    return jax.nn.relu(out + sc)


def _make_params(key, in_planes, planes, with_shortcut):
    ks = jax.random.split(key, 9)
    p = {
        "w1": 0.2 * jax.random.normal(ks[0], (planes, in_planes, 3, 3), jnp.float32),
        "g1": 1.0 + 0.1 * jax.random.normal(ks[1], (planes,), jnp.float32),
        "b1": 0.1 * jax.random.normal(ks[2], (planes,), jnp.float32),
        "w2": 0.2 * jax.random.normal(ks[3], (planes, planes, 3, 3), jnp.float32),
        "g2": 1.0 + 0.1 * jax.random.normal(ks[4], (planes,), jnp.float32),
        "b2": 0.1 * jax.random.normal(ks[5], (planes,), jnp.float32),
    }
    if with_shortcut:
        p["ws"] = 0.2 * jax.random.normal(ks[6], (planes, in_planes, 1, 1), jnp.float32)
        p["gs"] = 1.0 + 0.1 * jax.random.normal(ks[7], (planes,), jnp.float32)
        p["bs"] = 0.1 * jax.random.normal(ks[8], (planes,), jnp.float32)
    return p


if __name__ == "__main__":
    key = jax.random.PRNGKey(0)
    k_par, k_x, k_par2, k_x2 = jax.random.split(key, 4)

    # Case 1: stride-2 block with projection shortcut (in_planes != planes).
    in_planes, planes, stride = 4, 8, 2
    params = _make_params(k_par, in_planes, planes, True)
    x = jax.random.normal(k_x, (2, in_planes, 16, 16), jnp.float32)

    out = jax.block_until_ready(basic_block_forward(x, params, stride))
    assert out.shape == (2, planes, 8, 8), out.shape
    ref_bf16 = reference_forward(x, params, stride, jnp.bfloat16)
    ref_f32 = reference_forward(x, params, stride, jnp.float32)
    # Check vs a bf16-operand reference (same MXU numerics; the kernel adds
    # bf16 rounding of its stored intermediates, hence 2e-2 tolerances)...
    np.testing.assert_allclose(np.asarray(out), np.asarray(ref_bf16),
                               rtol=2e-2, atol=2e-2)
    # ...and a looser sanity check vs the pure-f32 spec.
    np.testing.assert_allclose(np.asarray(out), np.asarray(ref_f32),
                               rtol=5e-2, atol=5e-2)

    # Case 2: stride-1 block with identity shortcut (in_planes == planes).
    params2 = _make_params(k_par2, 8, 8, False)
    x2 = jax.random.normal(k_x2, (2, 8, 16, 16), jnp.float32)
    out2 = jax.block_until_ready(basic_block_forward(x2, params2, 1))
    assert out2.shape == (2, 8, 16, 16), out2.shape
    np.testing.assert_allclose(
        np.asarray(out2),
        np.asarray(reference_forward(x2, params2, 1, jnp.bfloat16)),
        rtol=2e-2, atol=2e-2)

    print("KERNEL_OK")
</pallas_src>

<mosaic_0001>
module attributes {stable_mosaic.version = 11 : i64} {
  func.func @_conv1_kernel(%arg0: i32, %arg1: memref<2x36x9x128xbf16, #tpu.memory_space<vmem>>, %arg2: memref<384x128xbf16, #tpu.memory_space<vmem>>, %arg3: memref<384x256xbf16, #tpu.memory_space<vmem>>, %arg4: memref<384x128xbf16, #tpu.memory_space<vmem>>, %arg5: memref<2x64x128xbf16, #tpu.memory_space<vmem>>, %arg6: memref<2x64x128xbf16, #tpu.memory_space<vmem>>, %arg7: memref<1x4x128xf32, #tpu.memory_space<vmem>>) attributes {dimension_semantics = [#tpu.dimension_semantics<parallel>], iteration_bounds = array<i64: 1>, scalar_prefetch = 0 : i64, scratch_operands = 0 : i64, tpu.core_type = #tpu.core_type<tc>, window_params = [{transform_indices = @transform_0, window_bounds = array<i64: 2, 36, 9, 128>}, {pipeline_mode = #tpu.pipeline_mode<synchronous>, transform_indices = @transform_1, window_bounds = array<i64: 384, 128>}, {pipeline_mode = #tpu.pipeline_mode<synchronous>, transform_indices = @transform_2, window_bounds = array<i64: 384, 256>}, {pipeline_mode = #tpu.pipeline_mode<synchronous>, transform_indices = @transform_3, window_bounds = array<i64: 384, 128>}, {transform_indices = @transform_4, window_bounds = array<i64: 2, 64, 128>}, {transform_indices = @transform_5, window_bounds = array<i64: 2, 64, 128>}, {transform_indices = @transform_6, window_bounds = array<i64: 1, 4, 128>}]} {
    %c0 = arith.constant 0 : index
    %c0_0 = arith.constant 0 : index
    %c0_1 = arith.constant 0 : index
    %c0_2 = arith.constant 0 : index
    %0 = vector.load %arg1[%c0, %c0_0, %c0_1, %c0_2] : memref<2x36x9x128xbf16, #tpu.memory_space<vmem>>, vector<1x8x8x128xbf16>
    %1 = vector.shape_cast %0 : vector<1x8x8x128xbf16> to vector<8x8x128xbf16>
    %2 = vector.shape_cast %1 : vector<8x8x128xbf16> to vector<64x128xbf16>
    %c0_3 = arith.constant 0 : index
    %c9 = arith.constant 9 : index
    %c0_4 = arith.constant 0 : index
    %c0_5 = arith.constant 0 : index
    %3 = vector.load %arg1[%c0_3, %c9, %c0_4, %c0_5] : memref<2x36x9x128xbf16, #tpu.memory_space<vmem>>, vector<1x8x8x128xbf16>
    %4 = vector.shape_cast %3 : vector<1x8x8x128xbf16> to vector<8x8x128xbf16>
    %5 = vector.shape_cast %4 : vector<8x8x128xbf16> to vector<64x128xbf16>
    %c0_6 = arith.constant 0 : index
    %c0_7 = arith.constant 0 : index
    %c1 = arith.constant 1 : index
    %c0_8 = arith.constant 0 : index
    %6 = vector.load %arg1[%c0_6, %c0_7, %c1, %c0_8] : memref<2x36x9x128xbf16, #tpu.memory_space<vmem>>, vector<1x8x8x128xbf16>
    %7 = vector.shape_cast %6 : vector<1x8x8x128xbf16> to vector<8x8x128xbf16>
    %8 = vector.shape_cast %7 : vector<8x8x128xbf16> to vector<64x128xbf16>
    %9 = tpu.concatenate %2, %5, %8 in 1 : vector<64x128xbf16>, vector<64x128xbf16>, vector<64x128xbf16> -> vector<64x384xbf16>
    %c1_9 = arith.constant 1 : index
    %c0_10 = arith.constant 0 : index
    %c0_11 = arith.constant 0 : index
    %c0_12 = arith.constant 0 : index
    %10 = vector.load %arg1[%c1_9, %c0_10, %c0_11, %c0_12] : memref<2x36x9x128xbf16, #tpu.memory_space<vmem>>, vector<1x8x8x128xbf16>
    %11 = vector.shape_cast %10 : vector<1x8x8x128xbf16> to vector<8x8x128xbf16>
    %12 = vector.shape_cast %11 : vector<8x8x128xbf16> to vector<64x128xbf16>
    %c1_13 = arith.constant 1 : index
    %c9_14 = arith.constant 9 : index
    %c0_15 = arith.constant 0 : index
    %c0_16 = arith.constant 0 : index
    %13 = vector.load %arg1[%c1_13, %c9_14, %c0_15, %c0_16] : memref<2x36x9x128xbf16, #tpu.memory_space<vmem>>, vector<1x8x8x128xbf16>
    %14 = vector.shape_cast %13 : vector<1x8x8x128xbf16> to vector<8x8x128xbf16>
    %15 = vector.shape_cast %14 : vector<8x8x128xbf16> to vector<64x128xbf16>
    %c1_17 = arith.constant 1 : index
    %c0_18 = arith.constant 0 : index
    %c1_19 = arith.constant 1 : index
    %c0_20 = arith.constant 0 : index
    %16 = vector.load %arg1[%c1_17, %c0_18, %c1_19, %c0_20] : memref<2x36x9x128xbf16, #tpu.memory_space<vmem>>, vector<1x8x8x128xbf16>
    %17 = vector.shape_cast %16 : vector<1x8x8x128xbf16> to vector<8x8x128xbf16>
    %18 = vector.shape_cast %17 : vector<8x8x128xbf16> to vector<64x128xbf16>
    %19 = tpu.concatenate %12, %15, %18 in 1 : vector<64x128xbf16>, vector<64x128xbf16>, vector<64x128xbf16> -> vector<64x384xbf16>
    %20 = tpu.concatenate %9, %19 in 0 : vector<64x384xbf16>, vector<64x384xbf16> -> vector<128x384xbf16>
    %c0_21 = arith.constant 0 : index
    %c18 = arith.constant 18 : index
    %c0_22 = arith.constant 0 : index
    %c0_23 = arith.constant 0 : index
    %21 = vector.load %arg1[%c0_21, %c18, %c0_22, %c0_23] : memref<2x36x9x128xbf16, #tpu.memory_space<vmem>>, vector<1x8x8x128xbf16>
    %22 = vector.shape_cast %21 : vector<1x8x8x128xbf16> to vector<8x8x128xbf16>
    %23 = vector.shape_cast %22 : vector<8x8x128xbf16> to vector<64x128xbf16>
    %c0_24 = arith.constant 0 : index
    %c27 = arith.constant 27 : index
    %c0_25 = arith.constant 0 : index
    %c0_26 = arith.constant 0 : index
    %24 = vector.load %arg1[%c0_24, %c27, %c0_25, %c0_26] : memref<2x36x9x128xbf16, #tpu.memory_space<vmem>>, vector<1x8x8x128xbf16>
    %25 = vector.shape_cast %24 : vector<1x8x8x128xbf16> to vector<8x8x128xbf16>
    %26 = vector.shape_cast %25 : vector<8x8x128xbf16> to vector<64x128xbf16>
    %c0_27 = arith.constant 0 : index
    %c18_28 = arith.constant 18 : index
    %c1_29 = arith.constant 1 : index
    %c0_30 = arith.constant 0 : index
    %27 = vector.load %arg1[%c0_27, %c18_28, %c1_29, %c0_30] : memref<2x36x9x128xbf16, #tpu.memory_space<vmem>>, vector<1x8x8x128xbf16>
    %28 = vector.shape_cast %27 : vector<1x8x8x128xbf16> to vector<8x8x128xbf16>
    %29 = vector.shape_cast %28 : vector<8x8x128xbf16> to vector<64x128xbf16>
    %30 = tpu.concatenate %23, %26, %29 in 1 : vector<64x128xbf16>, vector<64x128xbf16>, vector<64x128xbf16> -> vector<64x384xbf16>
    %c1_31 = arith.constant 1 : index
    %c18_32 = arith.constant 18 : index
    %c0_33 = arith.constant 0 : index
    %c0_34 = arith.constant 0 : index
    %31 = vector.load %arg1[%c1_31, %c18_32, %c0_33, %c0_34] : memref<2x36x9x128xbf16, #tpu.memory_space<vmem>>, vector<1x8x8x128xbf16>
    %32 = vector.shape_cast %31 : vector<1x8x8x128xbf16> to vector<8x8x128xbf16>
    %33 = vector.shape_cast %32 : vector<8x8x128xbf16> to vector<64x128xbf16>
    %c1_35 = arith.constant 1 : index
    %c27_36 = arith.constant 27 : index
    %c0_37 = arith.constant 0 : index
    %c0_38 = arith.constant 0 : index
    %34 = vector.load %arg1[%c1_35, %c27_36, %c0_37, %c0_38] : memref<2x36x9x128xbf16, #tpu.memory_space<vmem>>, vector<1x8x8x128xbf16>
    %35 = vector.shape_cast %34 : vector<1x8x8x128xbf16> to vector<8x8x128xbf16>
    %36 = vector.shape_cast %35 : vector<8x8x128xbf16> to vector<64x128xbf16>
    %c1_39 = arith.constant 1 : index
    %c18_40 = arith.constant 18 : index
    %c1_41 = arith.constant 1 : index
    %c0_42 = arith.constant 0 : index
    %37 = vector.load %arg1[%c1_39, %c18_40, %c1_41, %c0_42] : memref<2x36x9x128xbf16, #tpu.memory_space<vmem>>, vector<1x8x8x128xbf16>
    %38 = vector.shape_cast %37 : vector<1x8x8x128xbf16> to vector<8x8x128xbf16>
    %39 = vector.shape_cast %38 : vector<8x8x128xbf16> to vector<64x128xbf16>
    %40 = tpu.concatenate %33, %36, %39 in 1 : vector<64x128xbf16>, vector<64x128xbf16>, vector<64x128xbf16> -> vector<64x384xbf16>
    %41 = tpu.concatenate %30, %40 in 0 : vector<64x384xbf16>, vector<64x384xbf16> -> vector<128x384xbf16>
    %c0_43 = arith.constant 0 : index
    %c1_44 = arith.constant 1 : index
    %c0_45 = arith.constant 0 : index
    %c0_46 = arith.constant 0 : index
    %42 = vector.load %arg1[%c0_43, %c1_44, %c0_45, %c0_46] : memref<2x36x9x128xbf16, #tpu.memory_space<vmem>>, vector<1x8x8x128xbf16>
    %43 = vector.shape_cast %42 : vector<1x8x8x128xbf16> to vector<8x8x128xbf16>
    %44 = vector.shape_cast %43 : vector<8x8x128xbf16> to vector<64x128xbf16>
    %c0_47 = arith.constant 0 : index
    %c10 = arith.constant 10 : index
    %c0_48 = arith.constant 0 : index
    %c0_49 = arith.constant 0 : index
    %45 = vector.load %arg1[%c0_47, %c10, %c0_48, %c0_49] : memref<2x36x9x128xbf16, #tpu.memory_space<vmem>>, vector<1x8x8x128xbf16>
    %46 = vector.shape_cast %45 : vector<1x8x8x128xbf16> to vector<8x8x128xbf16>
    %47 = vector.shape_cast %46 : vector<8x8x128xbf16> to vector<64x128xbf16>
    %c0_50 = arith.constant 0 : index
    %c1_51 = arith.constant 1 : index
    %c1_52 = arith.constant 1 : index
    %c0_53 = arith.constant 0 : index
    %48 = vector.load %arg1[%c0_50, %c1_51, %c1_52, %c0_53] : memref<2x36x9x128xbf16, #tpu.memory_space<vmem>>, vector<1x8x8x128xbf16>
    %49 = vector.shape_cast %48 : vector<1x8x8x128xbf16> to vector<8x8x128xbf16>
    %50 = vector.shape_cast %49 : vector<8x8x128xbf16> to vector<64x128xbf16>
    %51 = tpu.concatenate %44, %47, %50 in 1 : vector<64x128xbf16>, vector<64x128xbf16>, vector<64x128xbf16> -> vector<64x384xbf16>
    %c1_54 = arith.constant 1 : index
    %c1_55 = arith.constant 1 : index
    %c0_56 = arith.constant 0 : index
    %c0_57 = arith.constant 0 : index
    %52 = vector.load %arg1[%c1_54, %c1_55, %c0_56, %c0_57] : memref<2x36x9x128xbf16, #tpu.memory_space<vmem>>, vector<1x8x8x128xbf16>
    %53 = vector.shape_cast %52 : vector<1x8x8x128xbf16> to vector<8x8x128xbf16>
    %54 = vector.shape_cast %53 : vector<8x8x128xbf16> to vector<64x128xbf16>
    %c1_58 = arith.constant 1 : index
    %c10_59 = arith.constant 10 : index
    %c0_60 = arith.constant 0 : index
    %c0_61 = arith.constant 0 : index
    %55 = vector.load %arg1[%c1_58, %c10_59, %c0_60, %c0_61] : memref<2x36x9x128xbf16, #tpu.memory_space<vmem>>, vector<1x8x8x128xbf16>
    %56 = vector.shape_cast %55 : vector<1x8x8x128xbf16> to vector<8x8x128xbf16>
    %57 = vector.shape_cast %56 : vector<8x8x128xbf16> to vector<64x128xbf16>
    %c1_62 = arith.constant 1 : index
    %c1_63 = arith.constant 1 : index
    %c1_64 = arith.constant 1 : index
    %c0_65 = arith.constant 0 : index
    %58 = vector.load %arg1[%c1_62, %c1_63, %c1_64, %c0_65] : memref<2x36x9x128xbf16, #tpu.memory_space<vmem>>, vector<1x8x8x128xbf16>
    %59 = vector.shape_cast %58 : vector<1x8x8x128xbf16> to vector<8x8x128xbf16>
    %60 = vector.shape_cast %59 : vector<8x8x128xbf16> to vector<64x128xbf16>
    %61 = tpu.concatenate %54, %57, %60 in 1 : vector<64x128xbf16>, vector<64x128xbf16>, vector<64x128xbf16> -> vector<64x384xbf16>
    %62 = tpu.concatenate %51, %61 in 0 : vector<64x384xbf16>, vector<64x384xbf16> -> vector<128x384xbf16>
    %c0_66 = arith.constant 0 : index
    %c0_67 = arith.constant 0 : index
    %63 = vector.load %arg2[%c0_66, %c0_67] : memref<384x128xbf16, #tpu.memory_space<vmem>>, vector<384x128xbf16>
    %cst = arith.constant dense<0.000000e+00> : vector<128x128xf32>
    %64 = tpu.matmul %20, %63, %cst {dimension_numbers = #tpu.dot_dimension_numbers<[1], [0], [0], [1], [0, 0, 1, 1], [], []>} : vector<128x384xbf16>, vector<384x128xbf16>, vector<128x128xf32> -> vector<128x128xf32>
    %c0_68 = arith.constant 0 : index
    %c0_69 = arith.constant 0 : index
    %65 = vector.load %arg3[%c0_68, %c0_69] : memref<384x256xbf16, #tpu.memory_space<vmem>>, vector<384x256xbf16>
    %cst_70 = arith.constant dense<0.000000e+00> : vector<128x256xf32>
    %66 = tpu.matmul %41, %65, %cst_70 {dimension_numbers = #tpu.dot_dimension_numbers<[1], [0], [0], [1], [0, 0, 1, 1], [], []>} : vector<128x384xbf16>, vector<384x256xbf16>, vector<128x256xf32> -> vector<128x256xf32>
    %67 = vector.extract_strided_slice %66 {offsets = [0, 0], sizes = [128, 128], strides = [1, 1]} : vector<128x256xf32> to vector<128x128xf32>
    %68 = arith.addf %64, %67 : vector<128x128xf32>
    %c0_71 = arith.constant 0 : index
    %c0_72 = arith.constant 0 : index
    %69 = vector.load %arg4[%c0_71, %c0_72] : memref<384x128xbf16, #tpu.memory_space<vmem>>, vector<384x128xbf16>
    %cst_73 = arith.constant dense<0.000000e+00> : vector<128x128xf32>
    %70 = tpu.matmul %62, %69, %cst_73 {dimension_numbers = #tpu.dot_dimension_numbers<[1], [0], [0], [1], [0, 0, 1, 1], [], []>} : vector<128x384xbf16>, vector<384x128xbf16>, vector<128x128xf32> -> vector<128x128xf32>
    %71 = arith.addf %68, %70 : vector<128x128xf32>
    %72 = vector.shape_cast %71 : vector<128x128xf32> to vector<2x64x128xf32>
    %73 = arith.truncf %72 : vector<2x64x128xf32> to vector<2x64x128xbf16>
    %c0_74 = arith.constant 0 : index
    %c0_75 = arith.constant 0 : index
    %c0_76 = arith.constant 0 : index
    %74 = vector.load %arg5[%c0_74, %c0_75, %c0_76] : memref<2x64x128xbf16, #tpu.memory_space<vmem>>, vector<2x64x128xbf16>
    tpu.vector_store %arg5[%c0_74, %c0_75, %c0_76], %73 {strides = array<i32>} : memref<2x64x128xbf16, #tpu.memory_space<vmem>>, vector<2x64x128xbf16>,
    %cst_77 = arith.constant dense<0.000000e+00> : vector<128xf32>
    %75 = vector.multi_reduction <add>, %71, %cst_77 [0] : vector<128x128xf32> to vector<128xf32>
    %76 = vector.shape_cast %75 : vector<128xf32> to vector<1x128xf32>
    %77 = arith.mulf %71, %71 : vector<128x128xf32>
    %cst_78 = arith.constant dense<0.000000e+00> : vector<128xf32>
    %78 = vector.multi_reduction <add>, %77, %cst_78 [0] : vector<128x128xf32> to vector<128xf32>
    %79 = vector.shape_cast %78 : vector<128xf32> to vector<1x128xf32>
    %80 = vector.extract_strided_slice %66 {offsets = [0, 128], sizes = [128, 128], strides = [1, 1]} : vector<128x256xf32> to vector<128x128xf32>
    %81 = vector.shape_cast %80 : vector<128x128xf32> to vector<2x64x128xf32>
    %82 = arith.truncf %81 : vector<2x64x128xf32> to vector<2x64x128xbf16>
    %c0_79 = arith.constant 0 : index
    %c0_80 = arith.constant 0 : index
    %c0_81 = arith.constant 0 : index
    %83 = vector.load %arg6[%c0_79, %c0_80, %c0_81] : memref<2x64x128xbf16, #tpu.memory_space<vmem>>, vector<2x64x128xbf16>
    tpu.vector_store %arg6[%c0_79, %c0_80, %c0_81], %82 {strides = array<i32>} : memref<2x64x128xbf16, #tpu.memory_space<vmem>>, vector<2x64x128xbf16>,
    %cst_82 = arith.constant dense<0.000000e+00> : vector<128xf32>
    %84 = vector.multi_reduction <add>, %80, %cst_82 [0] : vector<128x128xf32> to vector<128xf32>
    %85 = vector.shape_cast %84 : vector<128xf32> to vector<1x128xf32>
    %86 = arith.mulf %80, %80 : vector<128x128xf32>
    %cst_83 = arith.constant dense<0.000000e+00> : vector<128xf32>
    %87 = vector.multi_reduction <add>, %86, %cst_83 [0] : vector<128x128xf32> to vector<128xf32>
    %88 = vector.shape_cast %87 : vector<128xf32> to vector<1x128xf32>
    %89 = tpu.concatenate %76, %79, %85, %88 in 0 : vector<1x128xf32>, vector<1x128xf32>, vector<1x128xf32>, vector<1x128xf32> -> vector<4x128xf32>
    %c0_84 = arith.constant 0 : index
    %c0_85 = arith.constant 0 : index
    %c0_86 = arith.constant 0 : index
    %90 = vector.load %arg7[%c0_84, %c0_85, %c0_86] : memref<1x4x128xf32, #tpu.memory_space<vmem>>, vector<1x4x128xf32>
    %91 = vector.shape_cast %90 : vector<1x4x128xf32> to vector<4x128xf32>
    %92 = vector.shape_cast %89 : vector<4x128xf32> to vector<1x4x128xf32>
    tpu.vector_store %arg7[%c0_84, %c0_85, %c0_86], %92 {strides = array<i32>} : memref<1x4x128xf32, #tpu.memory_space<vmem>>, vector<1x4x128xf32>,
    return
  }
  func.func @transform_0(%arg0: i32) -> (i32, i32, i32, i32) {
    %c0_i32 = arith.constant 0 : i32
    %c0_i32_0 = arith.constant 0 : i32
    %c0_i32_1 = arith.constant 0 : i32
    %c0_i32_2 = arith.constant 0 : i32
    return %arg0, %c0_i32, %c0_i32_0, %c0_i32_1 : i32, i32, i32, i32
  }
  func.func @transform_1(%arg0: i32) -> (i32, i32) {
    %c0_i32 = arith.constant 0 : i32
    %c0_i32_0 = arith.constant 0 : i32
    %c0_i32_1 = arith.constant 0 : i32
    return %c0_i32, %c0_i32_0 : i32, i32
  }
  func.func @transform_2(%arg0: i32) -> (i32, i32) {
    %c0_i32 = arith.constant 0 : i32
    %c0_i32_0 = arith.constant 0 : i32
    %c0_i32_1 = arith.constant 0 : i32
    return %c0_i32, %c0_i32_0 : i32, i32
  }
  func.func @transform_3(%arg0: i32) -> (i32, i32) {
    %c0_i32 = arith.constant 0 : i32
    %c0_i32_0 = arith.constant 0 : i32
    %c0_i32_1 = arith.constant 0 : i32
    return %c0_i32, %c0_i32_0 : i32, i32
  }
  func.func @transform_4(%arg0: i32) -> (i32, i32, i32) {
    %c0_i32 = arith.constant 0 : i32
    %c0_i32_0 = arith.constant 0 : i32
    %c0_i32_1 = arith.constant 0 : i32
    return %arg0, %c0_i32, %c0_i32_0 : i32, i32, i32
  }
  func.func @transform_5(%arg0: i32) -> (i32, i32, i32) {
    %c0_i32 = arith.constant 0 : i32
    %c0_i32_0 = arith.constant 0 : i32
    %c0_i32_1 = arith.constant 0 : i32
    return %arg0, %c0_i32, %c0_i32_0 : i32, i32, i32
  }
  func.func @transform_6(%arg0: i32) -> (i32, i32, i32) {
    %c0_i32 = arith.constant 0 : i32
    %c0_i32_0 = arith.constant 0 : i32
    %c0_i32_1 = arith.constant 0 : i32
    return %arg0, %c0_i32, %c0_i32_0 : i32, i32, i32
  }
}

</mosaic_0001>

<llo_original>
// kernel: tpu_custom_call.1
$region0: #{tpu_custom_call.1}
  #allocation0 [shape = 'u32[]', space=smem, size = 0x4, offset = 0x4, fixed_abs, tag = 'smem constant byte address 0x4 - core index']
  #allocation1 [shape = 'u32[72,128]{1,0:T(1,128)}', space=vmem, size = 0x9000, scoped, tag = 'internal scratch']
  %s0 = inlined_call_operand.vmem [shape: bf16[2,36,9,128], index: 0, kind: input, shape index: {}]
  %s1 = inlined_call_operand.vmem [shape: bf16[384,128], index: 1, kind: input, shape index: {}]
  %s2 = inlined_call_operand.vmem [shape: bf16[384,256], index: 2, kind: input, shape index: {}]
  %s3 = inlined_call_operand.vmem [shape: bf16[384,128], index: 3, kind: input, shape index: {}]
  %s4 = inlined_call_operand.hbm [shape: bf16[2,64,128], index: 4, kind: output, shape index: {0}]
  %s5 = inlined_call_operand.hbm [shape: bf16[2,64,128], index: 5, kind: output, shape index: {1}]
  %s6 = inlined_call_operand.hbm [shape: f32[1,4,128], index: 6, kind: output, shape index: {2}]
  %7 = xla_tuple %s4, %s5, %s6
  %s8 = sld [smem:[#allocation0]]
  $region42: #{tpu_custom_call.1} parent=0
    _
  %s10 = ssub.s32 1, %s8
  %s11 = scalar_select 0, %s10, %s8
  $region1: #{tpu_custom_call.1} parent=0
    #allocation2 [shape = 'u8[32768]{0}', space=vmem, size = 0x8000, scoped, tag = 'output window, operand 0, single buffered']
    #allocation3 [shape = 's32[1]{0}', space=sflag, size = 0x4, scoped, tag = 'scoped memory for tpu_custom_call.1']
    #allocation4 [shape = 'u8[32768]{0}', space=vmem, size = 0x8000, scoped, tag = 'output window, operand 1, single buffered']
    #allocation5 [shape = 's32[1]{0}', space=sflag, size = 0x4, scoped, tag = 'scoped memory for tpu_custom_call.1']
    #allocation6 [shape = 'u8[2048]{0}', space=vmem, size = 0x800, scoped, tag = 'output window, operand 2, single buffered']
    %12 = vsyncpa [#allocation3], 0
    %13 = vsyncpa [#allocation5], 0
    // Predicated region
    $region2: #{tpu_custom_call.1} parent=1 // pred_check
      _
    $region3: #{tpu_custom_call.1} parent=1 // pred_check_branch
      %15 = sbr.rel (0) target = $region5
    $region4: #{tpu_custom_call.1} parent=1 // pred_region
      _
    $region5: #{tpu_custom_call.1} parent=1 // pred_fallthru
      _
    // Predicated region
    $region6: #{tpu_custom_call.1} parent=1 // pred_check
      _
    $region7: #{tpu_custom_call.1} parent=1 // pred_check_branch
      %17 = sbr.rel (0) target = $region9
    $region8: #{tpu_custom_call.1} parent=1 // pred_region
      _
    $region9: #{tpu_custom_call.1} parent=1 // pred_fallthru
      _
    // Predicated region
    $region10: #{tpu_custom_call.1} parent=1 // pred_check
      _
    $region11: #{tpu_custom_call.1} parent=1 // pred_check_branch
      %19 = sbr.rel (0) target = $region13
    $region12: #{tpu_custom_call.1} parent=1 // pred_region
      _
    $region13: #{tpu_custom_call.1} parent=1 // pred_fallthru
      _
    // Predicated region
    $region14: #{tpu_custom_call.1} parent=1 // pred_check
      _
    $region15: #{tpu_custom_call.1} parent=1 // pred_check_branch
      %21 = sbr.rel (0) target = $region17
    $region16: #{tpu_custom_call.1} parent=1 // pred_region
      _
    $region17: #{tpu_custom_call.1} parent=1 // pred_fallthru
      _
    %v22 = vld [vmem:[%s0] sm:$0xf]
    %v23 = vld [vmem:[%s0 + $0x8] sm:$0xf]
    %v24 = vld [vmem:[%s0 + $0x10] sm:$0xf]
    %v25 = vld [vmem:[%s0 + $0x18] sm:$0xf]
    %v26 = vld [vmem:[%s0 + $0x20] sm:$0xf]
    %v27 = vld [vmem:[%s0 + $0x28] sm:$0xf]
    %v28 = vld [vmem:[%s0 + $0x30] sm:$0xf]
    %v29 = vld [vmem:[%s0 + $0x38] sm:$0xf]
    %s30 = scalar_lea.vmem %s0, 72
    %v31 = vld [vmem:[%s30] sm:$0xf]
    %v32 = vld [vmem:[%s30 + $0x8] sm:$0xf]
    %v33 = vld [vmem:[%s30 + $0x10] sm:$0xf]
    %v34 = vld [vmem:[%s30 + $0x18] sm:$0xf]
    %v35 = vld [vmem:[%s30 + $0x20] sm:$0xf]
    %v36 = vld [vmem:[%s30 + $0x28] sm:$0xf]
    %v37 = vld [vmem:[%s30 + $0x30] sm:$0xf]
    %v38 = vld [vmem:[%s30 + $0x38] sm:$0xf]
    %v39 = vld [vmem:[%s0 + $0x4] sm:$0x1]
    %v40 = vld [vmem:[%s0 + $0xc] sm:$0x1]
    %v41 = vld [vmem:[%s0 + $0x14] sm:$0x1]
    %v42 = vld [vmem:[%s0 + $0x1c] sm:$0x1]
    %v43 = vld [vmem:[%s0 + $0x24] sm:$0x1]
    %v44 = vld [vmem:[%s0 + $0x2c] sm:$0x1]
    %v45 = vld [vmem:[%s0 + $0x34] sm:$0x1]
    %v46 = vld [vmem:[%s0 + $0x3c] sm:$0x1]
    %vm47 = vsmask.f32 3328
    %vm48 = vsmask.f32 7440
    %vm49 = vmor %vm47, %vm48
    %v51 = vshrl.u32 %v22, 16
    %v53 = vrot.slane %v51, 4
    %v54 = vshll.u32 %v22, 16
    %v56 = vrot.slane %v54, 5
    %v57 = vor.u32 %v53, %v56
    %v58 = vrot.slane %v57, 4
    %v60 = vshll.u32 %v39, 16
    %v62 = vrot.slane %v60, 5
    %v63 = vsel %vm49, %v58, %v62
    %v65 = vshrl.u32 %v23, 16
    %v67 = vrot.slane %v65, 4
    %v68 = vshll.u32 %v23, 16
    %v70 = vrot.slane %v68, 5
    %v71 = vor.u32 %v67, %v70
    %v72 = vrot.slane %v71, 4
    %v74 = vshll.u32 %v40, 16
    %v76 = vrot.slane %v74, 5
    %v77 = vsel %vm49, %v72, %v76
    %v79 = vshrl.u32 %v24, 16
    %v81 = vrot.slane %v79, 4
    %v82 = vshll.u32 %v24, 16
    %v84 = vrot.slane %v82, 5
    %v85 = vor.u32 %v81, %v84
    %v86 = vrot.slane %v85, 4
    %v88 = vshll.u32 %v41, 16
    %v90 = vrot.slane %v88, 5
    %v91 = vsel %vm49, %v86, %v90
    %v93 = vshrl.u32 %v25, 16
    %v95 = vrot.slane %v93, 4
    %v96 = vshll.u32 %v25, 16
    %v98 = vrot.slane %v96, 5
    %v99 = vor.u32 %v95, %v98
    %v100 = vrot.slane %v99, 4
    %v102 = vshll.u32 %v42, 16
    %v104 = vrot.slane %v102, 5
    %v105 = vsel %vm49, %v100, %v104
    %v107 = vshrl.u32 %v26, 16
    %v109 = vrot.slane %v107, 4
    %v110 = vshll.u32 %v26, 16
    %v112 = vrot.slane %v110, 5
    %v113 = vor.u32 %v109, %v112
    %v114 = vrot.slane %v113, 4
    %v116 = vshll.u32 %v43, 16
    %v118 = vrot.slane %v116, 5
    %v119 = vsel %vm49, %v114, %v118
    %v121 = vshrl.u32 %v27, 16
    %v123 = vrot.slane %v121, 4
    %v124 = vshll.u32 %v27, 16
    %v126 = vrot.slane %v124, 5
    %v127 = vor.u32 %v123, %v126
    %v128 = vrot.slane %v127, 4
    %v130 = vshll.u32 %v44, 16
    %v132 = vrot.slane %v130, 5
    %v133 = vsel %vm49, %v128, %v132
    %v135 = vshrl.u32 %v28, 16
    %v137 = vrot.slane %v135, 4
    %v138 = vshll.u32 %v28, 16
    %v140 = vrot.slane %v138, 5
    %v141 = vor.u32 %v137, %v140
    %v142 = vrot.slane %v141, 4
    %v144 = vshll.u32 %v45, 16
    %v146 = vrot.slane %v144, 5
    %v147 = vsel %vm49, %v142, %v146
    %v149 = vshrl.u32 %v29, 16
    %v151 = vrot.slane %v149, 4
    %v152 = vshll.u32 %v29, 16
    %v154 = vrot.slane %v152, 5
    %v155 = vor.u32 %v151, %v154
    %v156 = vrot.slane %v155, 4
    %v158 = vshll.u32 %v46, 16
    %v160 = vrot.slane %v158, 5
    %v161 = vsel %vm49, %v156, %v160
    %v170 = vunpack.c.l.b16 %v22
    %v171 = vunpack.c.l.b16 %v23
    %v172 = vunpack.c.l.b16 %v24
    %v173 = vunpack.c.l.b16 %v25
    %v174 = vunpack.c.l.b16 %v26
    %v175 = vunpack.c.l.b16 %v27
    %v176 = vunpack.c.l.b16 %v28
    %v177 = vunpack.c.l.b16 %v29
    %v178 = vpack.c.b16 %v171, %v170
    %v179 = vpack.c.b16 %v173, %v172
    %v180 = vpack.c.b16 %v175, %v174
    %v181 = vpack.c.b16 %v177, %v176
    %v194 = vunpack.c.l.b16 %v31
    %v195 = vunpack.c.l.b16 %v32
    %v196 = vunpack.c.l.b16 %v33
    %v197 = vunpack.c.l.b16 %v34
    %v198 = vunpack.c.l.b16 %v35
    %v199 = vunpack.c.l.b16 %v36
    %v200 = vunpack.c.l.b16 %v37
    %v201 = vunpack.c.l.b16 %v38
    %v202 = vpack.c.b16 %v195, %v194
    %v203 = vpack.c.b16 %v197, %v196
    %v204 = vpack.c.b16 %v199, %v198
    %v205 = vpack.c.b16 %v201, %v200
    %v210 = vunpack.c.l.b16 %v63
    %v211 = vunpack.c.l.b16 %v77
    %v212 = vunpack.c.l.b16 %v91
    %v213 = vunpack.c.l.b16 %v105
    %v214 = vunpack.c.l.b16 %v119
    %v215 = vunpack.c.l.b16 %v133
    %v216 = vunpack.c.l.b16 %v147
    %v217 = vunpack.c.l.b16 %v161
    %v218 = vpack.c.b16 %v211, %v210
    %v219 = vpack.c.b16 %v213, %v212
    %v220 = vpack.c.b16 %v215, %v214
    %v221 = vpack.c.b16 %v217, %v216
    %s226 = scalar_lea.vmem %s0, 288
    %v227 = vld [vmem:[%s226] sm:$0xf]
    %v228 = vld [vmem:[%s226 + $0x8] sm:$0xf]
    %v229 = vld [vmem:[%s226 + $0x10] sm:$0xf]
    %v230 = vld [vmem:[%s226 + $0x18] sm:$0xf]
    %v231 = vld [vmem:[%s226 + $0x20] sm:$0xf]
    %v232 = vld [vmem:[%s226 + $0x28] sm:$0xf]
    %v233 = vld [vmem:[%s226 + $0x30] sm:$0xf]
    %v234 = vld [vmem:[%s226 + $0x38] sm:$0xf]
    %s235 = scalar_lea.vmem %s0, 360
    %v236 = vld [vmem:[%s235] sm:$0xf]
    %v237 = vld [vmem:[%s235 + $0x8] sm:$0xf]
    %v238 = vld [vmem:[%s235 + $0x10] sm:$0xf]
    %v239 = vld [vmem:[%s235 + $0x18] sm:$0xf]
    %v240 = vld [vmem:[%s235 + $0x20] sm:$0xf]
    %v241 = vld [vmem:[%s235 + $0x28] sm:$0xf]
    %v242 = vld [vmem:[%s235 + $0x30] sm:$0xf]
    %v243 = vld [vmem:[%s235 + $0x38] sm:$0xf]
    %v244 = vld [vmem:[%s226 + $0x4] sm:$0x1]
    %v245 = vld [vmem:[%s226 + $0xc] sm:$0x1]
    %v246 = vld [vmem:[%s226 + $0x14] sm:$0x1]
    %v247 = vld [vmem:[%s226 + $0x1c] sm:$0x1]
    %v248 = vld [vmem:[%s226 + $0x24] sm:$0x1]
    %v249 = vld [vmem:[%s226 + $0x2c] sm:$0x1]
    %v250 = vld [vmem:[%s226 + $0x34] sm:$0x1]
    %v251 = vld [vmem:[%s226 + $0x3c] sm:$0x1]
    %v253 = vshrl.u32 %v227, 16
    %v255 = vrot.slane %v253, 4
    %v256 = vshll.u32 %v227, 16
    %v258 = vrot.slane %v256, 5
    %v259 = vor.u32 %v255, %v258
    %v260 = vrot.slane %v259, 4
    %v262 = vshll.u32 %v244, 16
    %v264 = vrot.slane %v262, 5
    %v265 = vsel %vm49, %v260, %v264
    %v267 = vshrl.u32 %v228, 16
    %v269 = vrot.slane %v267, 4
    %v270 = vshll.u32 %v228, 16
    %v272 = vrot.slane %v270, 5
    %v273 = vor.u32 %v269, %v272
    %v274 = vrot.slane %v273, 4
    %v276 = vshll.u32 %v245, 16
    %v278 = vrot.slane %v276, 5
    %v279 = vsel %vm49, %v274, %v278
    %v281 = vshrl.u32 %v229, 16
    %v283 = vrot.slane %v281, 4
    %v284 = vshll.u32 %v229, 16
    %v286 = vrot.slane %v284, 5
    %v287 = vor.u32 %v283, %v286
    %v288 = vrot.slane %v287, 4
    %v290 = vshll.u32 %v246, 16
    %v292 = vrot.slane %v290, 5
    %v293 = vsel %vm49, %v288, %v292
    %v295 = vshrl.u32 %v230, 16
    %v297 = vrot.slane %v295, 4
    %v298 = vshll.u32 %v230, 16
    %v300 = vrot.slane %v298, 5
    %v301 = vor.u32 %v297, %v300
    %v302 = vrot.slane %v301, 4
    %v304 = vshll.u32 %v247, 16
    %v306 = vrot.slane %v304, 5
    %v307 = vsel %vm49, %v302, %v306
    %v309 = vshrl.u32 %v231, 16
    %v311 = vrot.slane %v309, 4
    %v312 = vshll.u32 %v231, 16
    %v314 = vrot.slane %v312, 5
    %v315 = vor.u32 %v311, %v314
    %v316 = vrot.slane %v315, 4
    %v318 = vshll.u32 %v248, 16
    %v320 = vrot.slane %v318, 5
    %v321 = vsel %vm49, %v316, %v320
    %v323 = vshrl.u32 %v232, 16
    %v325 = vrot.slane %v323, 4
    %v326 = vshll.u32 %v232, 16
    %v328 = vrot.slane %v326, 5
    %v329 = vor.u32 %v325, %v328
    %v330 = vrot.slane %v329, 4
    %v332 = vshll.u32 %v249, 16
    %v334 = vrot.slane %v332, 5
    %v335 = vsel %vm49, %v330, %v334
    %v337 = vshrl.u32 %v233, 16
    %v339 = vrot.slane %v337, 4
    %v340 = vshll.u32 %v233, 16
    %v342 = vrot.slane %v340, 5
    %v343 = vor.u32 %v339, %v342
    %v344 = vrot.slane %v343, 4
    %v346 = vshll.u32 %v250, 16
    %v348 = vrot.slane %v346, 5
    %v349 = vsel %vm49, %v344, %v348
    %v351 = vshrl.u32 %v234, 16
    %v353 = vrot.slane %v351, 4
    %v354 = vshll.u32 %v234, 16
    %v356 = vrot.slane %v354, 5
    %v357 = vor.u32 %v353, %v356
    %v358 = vrot.slane %v357, 4
    %v360 = vshll.u32 %v251, 16
    %v362 = vrot.slane %v360, 5
    %v363 = vsel %vm49, %v358, %v362
    %v372 = vunpack.c.l.b16 %v227
    %v373 = vunpack.c.l.b16 %v228
    %v374 = vunpack.c.l.b16 %v229
    %v375 = vunpack.c.l.b16 %v230
    %v376 = vunpack.c.l.b16 %v231
    %v377 = vunpack.c.l.b16 %v232
    %v378 = vunpack.c.l.b16 %v233
    %v379 = vunpack.c.l.b16 %v234
    %v380 = vpack.c.b16 %v373, %v372
    %v381 = vpack.c.b16 %v375, %v374
    %v382 = vpack.c.b16 %v377, %v376
    %v383 = vpack.c.b16 %v379, %v378
    %v396 = vunpack.c.l.b16 %v236
    %v397 = vunpack.c.l.b16 %v237
    %v398 = vunpack.c.l.b16 %v238
    %v399 = vunpack.c.l.b16 %v239
    %v400 = vunpack.c.l.b16 %v240
    %v401 = vunpack.c.l.b16 %v241
    %v402 = vunpack.c.l.b16 %v242
    %v403 = vunpack.c.l.b16 %v243
    %v404 = vpack.c.b16 %v397, %v396
    %v405 = vpack.c.b16 %v399, %v398
    %v406 = vpack.c.b16 %v401, %v400
    %v407 = vpack.c.b16 %v403, %v402
    %v412 = vunpack.c.l.b16 %v265
    %v413 = vunpack.c.l.b16 %v279
    %v414 = vunpack.c.l.b16 %v293
    %v415 = vunpack.c.l.b16 %v307
    %v416 = vunpack.c.l.b16 %v321
    %v417 = vunpack.c.l.b16 %v335
    %v418 = vunpack.c.l.b16 %v349
    %v419 = vunpack.c.l.b16 %v363
    %v420 = vpack.c.b16 %v413, %v412
    %v421 = vpack.c.b16 %v415, %v414
    %v422 = vpack.c.b16 %v417, %v416
    %v423 = vpack.c.b16 %v419, %v418
    %s428 = scalar_lea.vmem %s0, 144
    %v429 = vld [vmem:[%s428] sm:$0xf]
    %v430 = vld [vmem:[%s428 + $0x8] sm:$0xf]
    %v431 = vld [vmem:[%s428 + $0x10] sm:$0xf]
    %v432 = vld [vmem:[%s428 + $0x18] sm:$0xf]
    %v433 = vld [vmem:[%s428 + $0x20] sm:$0xf]
    %v434 = vld [vmem:[%s428 + $0x28] sm:$0xf]
    %v435 = vld [vmem:[%s428 + $0x30] sm:$0xf]
    %v436 = vld [vmem:[%s428 + $0x38] sm:$0xf]
    %s437 = scalar_lea.vmem %s0, 216
    %v438 = vld [vmem:[%s437] sm:$0xf]
    %v439 = vld [vmem:[%s437 + $0x8] sm:$0xf]
    %v440 = vld [vmem:[%s437 + $0x10] sm:$0xf]
    %v441 = vld [vmem:[%s437 + $0x18] sm:$0xf]
    %v442 = vld [vmem:[%s437 + $0x20] sm:$0xf]
    %v443 = vld [vmem:[%s437 + $0x28] sm:$0xf]
    %v444 = vld [vmem:[%s437 + $0x30] sm:$0xf]
    %v445 = vld [vmem:[%s437 + $0x38] sm:$0xf]
    %v446 = vld [vmem:[%s428 + $0x4] sm:$0x1]
    %v447 = vld [vmem:[%s428 + $0xc] sm:$0x1]
    %v448 = vld [vmem:[%s428 + $0x14] sm:$0x1]
    %v449 = vld [vmem:[%s428 + $0x1c] sm:$0x1]
    %v450 = vld [vmem:[%s428 + $0x24] sm:$0x1]
    %v451 = vld [vmem:[%s428 + $0x2c] sm:$0x1]
    %v452 = vld [vmem:[%s428 + $0x34] sm:$0x1]
    %v453 = vld [vmem:[%s428 + $0x3c] sm:$0x1]
    %v455 = vshrl.u32 %v429, 16
    %v457 = vrot.slane %v455, 4
    %v458 = vshll.u32 %v429, 16
    %v460 = vrot.slane %v458, 5
    %v461 = vor.u32 %v457, %v460
    %v462 = vrot.slane %v461, 4
    %v464 = vshll.u32 %v446, 16
    %v466 = vrot.slane %v464, 5
    %v467 = vsel %vm49, %v462, %v466
    %v469 = vshrl.u32 %v430, 16
    %v471 = vrot.slane %v469, 4
    %v472 = vshll.u32 %v430, 16
    %v474 = vrot.slane %v472, 5
    %v475 = vor.u32 %v471, %v474
    %v476 = vrot.slane %v475, 4
    %v478 = vshll.u32 %v447, 16
    %v480 = vrot.slane %v478, 5
    %v481 = vsel %vm49, %v476, %v480
    %v483 = vshrl.u32 %v431, 16
    %v485 = vrot.slane %v483, 4
    %v486 = vshll.u32 %v431, 16
    %v488 = vrot.slane %v486, 5
    %v489 = vor.u32 %v485, %v488
    %v490 = vrot.slane %v489, 4
    %v492 = vshll.u32 %v448, 16
    %v494 = vrot.slane %v492, 5
    %v495 = vsel %vm49, %v490, %v494
    %v497 = vshrl.u32 %v432, 16
    %v499 = vrot.slane %v497, 4
    %v500 = vshll.u32 %v432, 16
    %v502 = vrot.slane %v500, 5
    %v503 = vor.u32 %v499, %v502
    %v504 = vrot.slane %v503, 4
    %v506 = vshll.u32 %v449, 16
    %v508 = vrot.slane %v506, 5
    %v509 = vsel %vm49, %v504, %v508
    %v511 = vshrl.u32 %v433, 16
    %v513 = vrot.slane %v511, 4
    %v514 = vshll.u32 %v433, 16
    %v516 = vrot.slane %v514, 5
    %v517 = vor.u32 %v513, %v516
    %v518 = vrot.slane %v517, 4
    %v520 = vshll.u32 %v450, 16
    %v522 = vrot.slane %v520, 5
    %v523 = vsel %vm49, %v518, %v522
    %v525 = vshrl.u32 %v434, 16
    %v527 = vrot.slane %v525, 4
    %v528 = vshll.u32 %v434, 16
    %v530 = vrot.slane %v528, 5
    %v531 = vor.u32 %v527, %v530
    %v532 = vrot.slane %v531, 4
    %v534 = vshll.u32 %v451, 16
    %v536 = vrot.slane %v534, 5
    %v537 = vsel %vm49, %v532, %v536
    %v539 = vshrl.u32 %v435, 16
    %v541 = vrot.slane %v539, 4
    %v542 = vshll.u32 %v435, 16
    %v544 = vrot.slane %v542, 5
    %v545 = vor.u32 %v541, %v544
    %v546 = vrot.slane %v545, 4
    %v548 = vshll.u32 %v452, 16
    %v550 = vrot.slane %v548, 5
    %v551 = vsel %vm49, %v546, %v550
    %v553 = vshrl.u32 %v436, 16
    %v555 = vrot.slane %v553, 4
    %v556 = vshll.u32 %v436, 16
    %v558 = vrot.slane %v556, 5
    %v559 = vor.u32 %v555, %v558
    %v560 = vrot.slane %v559, 4
    %v562 = vshll.u32 %v453, 16
    %v564 = vrot.slane %v562, 5
    %v565 = vsel %vm49, %v560, %v564
    %v574 = vunpack.c.l.b16 %v429
    %v575 = vunpack.c.l.b16 %v430
    %v576 = vunpack.c.l.b16 %v431
    %v577 = vunpack.c.l.b16 %v432
    %v578 = vunpack.c.l.b16 %v433
    %v579 = vunpack.c.l.b16 %v434
    %v580 = vunpack.c.l.b16 %v435
    %v581 = vunpack.c.l.b16 %v436
    %v582 = vpack.c.b16 %v575, %v574
    %v583 = vpack.c.b16 %v577, %v576
    %v584 = vpack.c.b16 %v579, %v578
    %v585 = vpack.c.b16 %v581, %v580
    %v598 = vunpack.c.l.b16 %v438
    %v599 = vunpack.c.l.b16 %v439
    %v600 = vunpack.c.l.b16 %v440
    %v601 = vunpack.c.l.b16 %v441
    %v602 = vunpack.c.l.b16 %v442
    %v603 = vunpack.c.l.b16 %v443
    %v604 = vunpack.c.l.b16 %v444
    %v605 = vunpack.c.l.b16 %v445
    %v606 = vpack.c.b16 %v599, %v598
    %v607 = vpack.c.b16 %v601, %v600
    %v608 = vpack.c.b16 %v603, %v602
    %v609 = vpack.c.b16 %v605, %v604
    %v614 = vunpack.c.l.b16 %v467
    %v615 = vunpack.c.l.b16 %v481
    %v616 = vunpack.c.l.b16 %v495
    %v617 = vunpack.c.l.b16 %v509
    %v618 = vunpack.c.l.b16 %v523
    %v619 = vunpack.c.l.b16 %v537
    %v620 = vunpack.c.l.b16 %v551
    %v621 = vunpack.c.l.b16 %v565
    %v622 = vpack.c.b16 %v615, %v614
    %v623 = vpack.c.b16 %v617, %v616
    %v624 = vpack.c.b16 %v619, %v618
    %v625 = vpack.c.b16 %v621, %v620
    %s630 = scalar_lea.vmem %s0, 432
    %v631 = vld [vmem:[%s630] sm:$0xf]
    %v632 = vld [vmem:[%s630 + $0x8] sm:$0xf]
    %v633 = vld [vmem:[%s630 + $0x10] sm:$0xf]
    %v634 = vld [vmem:[%s630 + $0x18] sm:$0xf]
    %v635 = vld [vmem:[%s630 + $0x20] sm:$0xf]
    %v636 = vld [vmem:[%s630 + $0x28] sm:$0xf]
    %v637 = vld [vmem:[%s630 + $0x30] sm:$0xf]
    %v638 = vld [vmem:[%s630 + $0x38] sm:$0xf]
    %s639 = scalar_lea.vmem %s0, 504
    %v640 = vld [vmem:[%s639] sm:$0xf]
    %v641 = vld [vmem:[%s639 + $0x8] sm:$0xf]
    %v642 = vld [vmem:[%s639 + $0x10] sm:$0xf]
    %v643 = vld [vmem:[%s639 + $0x18] sm:$0xf]
    %v644 = vld [vmem:[%s639 + $0x20] sm:$0xf]
    %v645 = vld [vmem:[%s639 + $0x28] sm:$0xf]
    %v646 = vld [vmem:[%s639 + $0x30] sm:$0xf]
    %v647 = vld [vmem:[%s639 + $0x38] sm:$0xf]
    %v648 = vld [vmem:[%s630 + $0x4] sm:$0x1]
    %v649 = vld [vmem:[%s630 + $0xc] sm:$0x1]
    %v650 = vld [vmem:[%s630 + $0x14] sm:$0x1]
    %v651 = vld [vmem:[%s630 + $0x1c] sm:$0x1]
    %v652 = vld [vmem:[%s630 + $0x24] sm:$0x1]
    %v653 = vld [vmem:[%s630 + $0x2c] sm:$0x1]
    %v654 = vld [vmem:[%s630 + $0x34] sm:$0x1]
    %v655 = vld [vmem:[%s630 + $0x3c] sm:$0x1]
    %v657 = vshrl.u32 %v631, 16
    %v659 = vrot.slane %v657, 4
    %v660 = vshll.u32 %v631, 16
    %v662 = vrot.slane %v660, 5
    %v663 = vor.u32 %v659, %v662
    %v664 = vrot.slane %v663, 4
    %v666 = vshll.u32 %v648, 16
    %v668 = vrot.slane %v666, 5
    %v669 = vsel %vm49, %v664, %v668
    %v671 = vshrl.u32 %v632, 16
    %v673 = vrot.slane %v671, 4
    %v674 = vshll.u32 %v632, 16
    %v676 = vrot.slane %v674, 5
    %v677 = vor.u32 %v673, %v676
    %v678 = vrot.slane %v677, 4
    %v680 = vshll.u32 %v649, 16
    %v682 = vrot.slane %v680, 5
    %v683 = vsel %vm49, %v678, %v682
    %v685 = vshrl.u32 %v633, 16
    %v687 = vrot.slane %v685, 4
    %v688 = vshll.u32 %v633, 16
    %v690 = vrot.slane %v688, 5
    %v691 = vor.u32 %v687, %v690
    %v692 = vrot.slane %v691, 4
    %v694 = vshll.u32 %v650, 16
    %v696 = vrot.slane %v694, 5
    %v697 = vsel %vm49, %v692, %v696
    %v699 = vshrl.u32 %v634, 16
    %v701 = vrot.slane %v699, 4
    %v702 = vshll.u32 %v634, 16
    %v704 = vrot.slane %v702, 5
    %v705 = vor.u32 %v701, %v704
    %v706 = vrot.slane %v705, 4
    %v708 = vshll.u32 %v651, 16
    %v710 = vrot.slane %v708, 5
    %v711 = vsel %vm49, %v706, %v710
    %v713 = vshrl.u32 %v635, 16
    %v715 = vrot.slane %v713, 4
    %v716 = vshll.u32 %v635, 16
    %v718 = vrot.slane %v716, 5
    %v719 = vor.u32 %v715, %v718
    %v720 = vrot.slane %v719, 4
    %v722 = vshll.u32 %v652, 16
    %v724 = vrot.slane %v722, 5
    %v725 = vsel %vm49, %v720, %v724
    %v727 = vshrl.u32 %v636, 16
    %v729 = vrot.slane %v727, 4
    %v730 = vshll.u32 %v636, 16
    %v732 = vrot.slane %v730, 5
    %v733 = vor.u32 %v729, %v732
    %v734 = vrot.slane %v733, 4
    %v736 = vshll.u32 %v653, 16
    %v738 = vrot.slane %v736, 5
    %v739 = vsel %vm49, %v734, %v738
    %v741 = vshrl.u32 %v637, 16
    %v743 = vrot.slane %v741, 4
    %v744 = vshll.u32 %v637, 16
    %v746 = vrot.slane %v744, 5
    %v747 = vor.u32 %v743, %v746
    %v748 = vrot.slane %v747, 4
    %v750 = vshll.u32 %v654, 16
    %v752 = vrot.slane %v750, 5
    %v753 = vsel %vm49, %v748, %v752
    %v755 = vshrl.u32 %v638, 16
    %v757 = vrot.slane %v755, 4
    %v758 = vshll.u32 %v638, 16
    %v760 = vrot.slane %v758, 5
    %v761 = vor.u32 %v757, %v760
    %v762 = vrot.slane %v761, 4
    %v764 = vshll.u32 %v655, 16
    %v766 = vrot.slane %v764, 5
    %v767 = vsel %vm49, %v762, %v766
    %v776 = vunpack.c.l.b16 %v631
    %v777 = vunpack.c.l.b16 %v632
    %v778 = vunpack.c.l.b16 %v633
    %v779 = vunpack.c.l.b16 %v634
    %v780 = vunpack.c.l.b16 %v635
    %v781 = vunpack.c.l.b16 %v636
    %v782 = vunpack.c.l.b16 %v637
    %v783 = vunpack.c.l.b16 %v638
    %v784 = vpack.c.b16 %v777, %v776
    %v785 = vpack.c.b16 %v779, %v778
    %v786 = vpack.c.b16 %v781, %v780
    %v787 = vpack.c.b16 %v783, %v782
    %v800 = vunpack.c.l.b16 %v640
    %v801 = vunpack.c.l.b16 %v641
    %v802 = vunpack.c.l.b16 %v642
    %v803 = vunpack.c.l.b16 %v643
    %v804 = vunpack.c.l.b16 %v644
    %v805 = vunpack.c.l.b16 %v645
    %v806 = vunpack.c.l.b16 %v646
    %v807 = vunpack.c.l.b16 %v647
    %v808 = vpack.c.b16 %v801, %v800
    %v809 = vpack.c.b16 %v803, %v802
    %v810 = vpack.c.b16 %v805, %v804
    %v811 = vpack.c.b16 %v807, %v806
    %v816 = vunpack.c.l.b16 %v669
    %v817 = vunpack.c.l.b16 %v683
    %v818 = vunpack.c.l.b16 %v697
    %v819 = vunpack.c.l.b16 %v711
    %v820 = vunpack.c.l.b16 %v725
    %v821 = vunpack.c.l.b16 %v739
    %v822 = vunpack.c.l.b16 %v753
    %v823 = vunpack.c.l.b16 %v767
    %v824 = vpack.c.b16 %v817, %v816
    %v825 = vpack.c.b16 %v819, %v818
    %v826 = vpack.c.b16 %v821, %v820
    %v827 = vpack.c.b16 %v823, %v822
    %s832 = scalar_lea.vmem %s0, 8
    %v833 = vld [vmem:[%s832] sm:$0xf]
    %v834 = vld [vmem:[%s832 + $0x8] sm:$0xf]
    %v835 = vld [vmem:[%s832 + $0x10] sm:$0xf]
    %v836 = vld [vmem:[%s832 + $0x18] sm:$0xf]
    %v837 = vld [vmem:[%s832 + $0x20] sm:$0xf]
    %v838 = vld [vmem:[%s832 + $0x28] sm:$0xf]
    %v839 = vld [vmem:[%s832 + $0x30] sm:$0xf]
    %v840 = vld [vmem:[%s832 + $0x38] sm:$0xf]
    %s841 = scalar_lea.vmem %s0, 80
    %v842 = vld [vmem:[%s841] sm:$0xf]
    %v843 = vld [vmem:[%s841 + $0x8] sm:$0xf]
    %v844 = vld [vmem:[%s841 + $0x10] sm:$0xf]
    %v845 = vld [vmem:[%s841 + $0x18] sm:$0xf]
    %v846 = vld [vmem:[%s841 + $0x20] sm:$0xf]
    %v847 = vld [vmem:[%s841 + $0x28] sm:$0xf]
    %v848 = vld [vmem:[%s841 + $0x30] sm:$0xf]
    %v849 = vld [vmem:[%s841 + $0x38] sm:$0xf]
    %v850 = vld [vmem:[%s832 + $0x4] sm:$0x1]
    %v851 = vld [vmem:[%s832 + $0xc] sm:$0x1]
    %v852 = vld [vmem:[%s832 + $0x14] sm:$0x1]
    %v853 = vld [vmem:[%s832 + $0x1c] sm:$0x1]
    %v854 = vld [vmem:[%s832 + $0x24] sm:$0x1]
    %v855 = vld [vmem:[%s832 + $0x2c] sm:$0x1]
    %v856 = vld [vmem:[%s832 + $0x34] sm:$0x1]
    %v857 = vld [vmem:[%s832 + $0x3c] sm:$0x1]
    %v859 = vshrl.u32 %v833, 16
    %v861 = vrot.slane %v859, 4
    %v862 = vshll.u32 %v833, 16
    %v864 = vrot.slane %v862, 5
    %v865 = vor.u32 %v861, %v864
    %v866 = vrot.slane %v865, 4
    %v868 = vshll.u32 %v850, 16
    %v870 = vrot.slane %v868, 5
    %v871 = vsel %vm49, %v866, %v870
    %v873 = vshrl.u32 %v834, 16
    %v875 = vrot.slane %v873, 4
    %v876 = vshll.u32 %v834, 16
    %v878 = vrot.slane %v876, 5
    %v879 = vor.u32 %v875, %v878
    %v880 = vrot.slane %v879, 4
    %v882 = vshll.u32 %v851, 16
    %v884 = vrot.slane %v882, 5
    %v885 = vsel %vm49, %v880, %v884
    %v887 = vshrl.u32 %v835, 16
    %v889 = vrot.slane %v887, 4
    %v890 = vshll.u32 %v835, 16
    %v892 = vrot.slane %v890, 5
    %v893 = vor.u32 %v889, %v892
    %v894 = vrot.slane %v893, 4
    %v896 = vshll.u32 %v852, 16
    %v898 = vrot.slane %v896, 5
    %v899 = vsel %vm49, %v894, %v898
    %v901 = vshrl.u32 %v836, 16
    %v903 = vrot.slane %v901, 4
    %v904 = vshll.u32 %v836, 16
    %v906 = vrot.slane %v904, 5
    %v907 = vor.u32 %v903, %v906
    %v908 = vrot.slane %v907, 4
    %v910 = vshll.u32 %v853, 16
    %v912 = vrot.slane %v910, 5
    %v913 = vsel %vm49, %v908, %v912
    %v915 = vshrl.u32 %v837, 16
    %v917 = vrot.slane %v915, 4
    %v918 = vshll.u32 %v837, 16
    %v920 = vrot.slane %v918, 5
    %v921 = vor.u32 %v917, %v920
    %v922 = vrot.slane %v921, 4
    %v924 = vshll.u32 %v854, 16
    %v926 = vrot.slane %v924, 5
    %v927 = vsel %vm49, %v922, %v926
    %v929 = vshrl.u32 %v838, 16
    %v931 = vrot.slane %v929, 4
    %v932 = vshll.u32 %v838, 16
    %v934 = vrot.slane %v932, 5
    %v935 = vor.u32 %v931, %v934
    %v936 = vrot.slane %v935, 4
    %v938 = vshll.u32 %v855, 16
    %v940 = vrot.slane %v938, 5
    %v941 = vsel %vm49, %v936, %v940
    %v943 = vshrl.u32 %v839, 16
    %v945 = vrot.slane %v943, 4
    %v946 = vshll.u32 %v839, 16
    %v948 = vrot.slane %v946, 5
    %v949 = vor.u32 %v945, %v948
    %v950 = vrot.slane %v949, 4
    %v952 = vshll.u32 %v856, 16
    %v954 = vrot.slane %v952, 5
    %v955 = vsel %vm49, %v950, %v954
    %v957 = vshrl.u32 %v840, 16
    %v959 = vrot.slane %v957, 4
    %v960 = vshll.u32 %v840, 16
    %v962 = vrot.slane %v960, 5
    %v963 = vor.u32 %v959, %v962
    %v964 = vrot.slane %v963, 4
    %v966 = vshll.u32 %v857, 16
    %v968 = vrot.slane %v966, 5
    %v969 = vsel %vm49, %v964, %v968
    %v978 = vunpack.c.l.b16 %v833
    %v979 = vunpack.c.l.b16 %v834
    %v980 = vunpack.c.l.b16 %v835
    %v981 = vunpack.c.l.b16 %v836
    %v982 = vunpack.c.l.b16 %v837
    %v983 = vunpack.c.l.b16 %v838
    %v984 = vunpack.c.l.b16 %v839
    %v985 = vunpack.c.l.b16 %v840
    %v986 = vpack.c.b16 %v979, %v978
    %v987 = vpack.c.b16 %v981, %v980
    %v988 = vpack.c.b16 %v983, %v982
    %v989 = vpack.c.b16 %v985, %v984
    %v1002 = vunpack.c.l.b16 %v842
    %v1003 = vunpack.c.l.b16 %v843
    %v1004 = vunpack.c.l.b16 %v844
    %v1005 = vunpack.c.l.b16 %v845
    %v1006 = vunpack.c.l.b16 %v846
    %v1007 = vunpack.c.l.b16 %v847
    %v1008 = vunpack.c.l.b16 %v848
    %v1009 = vunpack.c.l.b16 %v849
    %v1010 = vpack.c.b16 %v1003, %v1002
    %v1011 = vpack.c.b16 %v1005, %v1004
    %v1012 = vpack.c.b16 %v1007, %v1006
    %v1013 = vpack.c.b16 %v1009, %v1008
    %v1018 = vunpack.c.l.b16 %v871
    %v1019 = vunpack.c.l.b16 %v885
    %v1020 = vunpack.c.l.b16 %v899
    %v1021 = vunpack.c.l.b16 %v913
    %v1022 = vunpack.c.l.b16 %v927
    %v1023 = vunpack.c.l.b16 %v941
    %v1024 = vunpack.c.l.b16 %v955
    %v1025 = vunpack.c.l.b16 %v969
    %v1026 = vpack.c.b16 %v1019, %v1018
    %v1027 = vpack.c.b16 %v1021, %v1020
    %v1028 = vpack.c.b16 %v1023, %v1022
    %v1029 = vpack.c.b16 %v1025, %v1024
    %s1034 = scalar_lea.vmem %s0, 296
    %v1035 = vld [vmem:[%s1034] sm:$0xf]
    %v1036 = vld [vmem:[%s1034 + $0x8] sm:$0xf]
    %v1037 = vld [vmem:[%s1034 + $0x10] sm:$0xf]
    %v1038 = vld [vmem:[%s1034 + $0x18] sm:$0xf]
    %v1039 = vld [vmem:[%s1034 + $0x20] sm:$0xf]
    %v1040 = vld [vmem:[%s1034 + $0x28] sm:$0xf]
    %v1041 = vld [vmem:[%s1034 + $0x30] sm:$0xf]
    %v1042 = vld [vmem:[%s1034 + $0x38] sm:$0xf]
    %s1043 = scalar_lea.vmem %s0, 368
    %v1044 = vld [vmem:[%s1043] sm:$0xf]
    %v1045 = vld [vmem:[%s1043 + $0x8] sm:$0xf]
    %v1046 = vld [vmem:[%s1043 + $0x10] sm:$0xf]
    %v1047 = vld [vmem:[%s1043 + $0x18] sm:$0xf]
    %v1048 = vld [vmem:[%s1043 + $0x20] sm:$0xf]
    %v1049 = vld [vmem:[%s1043 + $0x28] sm:$0xf]
    %v1050 = vld [vmem:[%s1043 + $0x30] sm:$0xf]
    %v1051 = vld [vmem:[%s1043 + $0x38] sm:$0xf]
    %v1052 = vld [vmem:[%s1034 + $0x4] sm:$0x1]
    %v1053 = vld [vmem:[%s1034 + $0xc] sm:$0x1]
    %v1054 = vld [vmem:[%s1034 + $0x14] sm:$0x1]
    %v1055 = vld [vmem:[%s1034 + $0x1c] sm:$0x1]
    %v1056 = vld [vmem:[%s1034 + $0x24] sm:$0x1]
    %v1057 = vld [vmem:[%s1034 + $0x2c] sm:$0x1]
    %v1058 = vld [vmem:[%s1034 + $0x34] sm:$0x1]
    %v1059 = vld [vmem:[%s1034 + $0x3c] sm:$0x1]
    %v1061 = vshrl.u32 %v1035, 16
    %v1063 = vrot.slane %v1061, 4
    %v1064 = vshll.u32 %v1035, 16
    %v1066 = vrot.slane %v1064, 5
    %v1067 = vor.u32 %v1063, %v1066
    %v1068 = vrot.slane %v1067, 4
    %v1070 = vshll.u32 %v1052, 16
    %v1072 = vrot.slane %v1070, 5
    %v1073 = vsel %vm49, %v1068, %v1072
    %v1075 = vshrl.u32 %v1036, 16
    %v1077 = vrot.slane %v1075, 4
    %v1078 = vshll.u32 %v1036, 16
    %v1080 = vrot.slane %v1078, 5
    %v1081 = vor.u32 %v1077, %v1080
    %v1082 = vrot.slane %v1081, 4
    %v1084 = vshll.u32 %v1053, 16
    %v1086 = vrot.slane %v1084, 5
    %v1087 = vsel %vm49, %v1082, %v1086
    %v1089 = vshrl.u32 %v1037, 16
    %v1091 = vrot.slane %v1089, 4
    %v1092 = vshll.u32 %v1037, 16
    %v1094 = vrot.slane %v1092, 5
    %v1095 = vor.u32 %v1091, %v1094
    %v1096 = vrot.slane %v1095, 4
    %v1098 = vshll.u32 %v1054, 16
    %v1100 = vrot.slane %v1098, 5
    %v1101 = vsel %vm49, %v1096, %v1100
    %v1103 = vshrl.u32 %v1038, 16
    %v1105 = vrot.slane %v1103, 4
    %v1106 = vshll.u32 %v1038, 16
    %v1108 = vrot.slane %v1106, 5
    %v1109 = vor.u32 %v1105, %v1108
    %v1110 = vrot.slane %v1109, 4
    %v1112 = vshll.u32 %v1055, 16
    %v1114 = vrot.slane %v1112, 5
    %v1115 = vsel %vm49, %v1110, %v1114
    %v1117 = vshrl.u32 %v1039, 16
    %v1119 = vrot.slane %v1117, 4
    %v1120 = vshll.u32 %v1039, 16
    %v1122 = vrot.slane %v1120, 5
    %v1123 = vor.u32 %v1119, %v1122
    %v1124 = vrot.slane %v1123, 4
    %v1126 = vshll.u32 %v1056, 16
    %v1128 = vrot.slane %v1126, 5
    %v1129 = vsel %vm49, %v1124, %v1128
    %v1131 = vshrl.u32 %v1040, 16
    %v1133 = vrot.slane %v1131, 4
    %v1134 = vshll.u32 %v1040, 16
    %v1136 = vrot.slane %v1134, 5
    %v1137 = vor.u32 %v1133, %v1136
    %v1138 = vrot.slane %v1137, 4
    %v1140 = vshll.u32 %v1057, 16
    %v1142 = vrot.slane %v1140, 5
    %v1143 = vsel %vm49, %v1138, %v1142
    %v1145 = vshrl.u32 %v1041, 16
    %v1147 = vrot.slane %v1145, 4
    %v1148 = vshll.u32 %v1041, 16
    %v1150 = vrot.slane %v1148, 5
    %v1151 = vor.u32 %v1147, %v1150
    %v1152 = vrot.slane %v1151, 4
    %v1154 = vshll.u32 %v1058, 16
    %v1156 = vrot.slane %v1154, 5
    %v1157 = vsel %vm49, %v1152, %v1156
    %v1159 = vshrl.u32 %v1042, 16
    %v1161 = vrot.slane %v1159, 4
    %v1162 = vshll.u32 %v1042, 16
    %v1164 = vrot.slane %v1162, 5
    %v1165 = vor.u32 %v1161, %v1164
    %v1166 = vrot.slane %v1165, 4
    %v1168 = vshll.u32 %v1059, 16
    %v1170 = vrot.slane %v1168, 5
    %v1171 = vsel %vm49, %v1166, %v1170
    %v1180 = vunpack.c.l.b16 %v1035
    %v1181 = vunpack.c.l.b16 %v1036
    %v1182 = vunpack.c.l.b16 %v1037
    %v1183 = vunpack.c.l.b16 %v1038
    %v1184 = vunpack.c.l.b16 %v1039
    %v1185 = vunpack.c.l.b16 %v1040
    %v1186 = vunpack.c.l.b16 %v1041
    %v1187 = vunpack.c.l.b16 %v1042
    %v1188 = vpack.c.b16 %v1181, %v1180
    %v1189 = vpack.c.b16 %v1183, %v1182
    %v1190 = vpack.c.b16 %v1185, %v1184
    %v1191 = vpack.c.b16 %v1187, %v1186
    %v1204 = vunpack.c.l.b16 %v1044
    %v1205 = vunpack.c.l.b16 %v1045
    %v1206 = vunpack.c.l.b16 %v1046
    %v1207 = vunpack.c.l.b16 %v1047
    %v1208 = vunpack.c.l.b16 %v1048
    %v1209 = vunpack.c.l.b16 %v1049
    %v1210 = vunpack.c.l.b16 %v1050
    %v1211 = vunpack.c.l.b16 %v1051
    %v1212 = vpack.c.b16 %v1205, %v1204
    %v1213 = vpack.c.b16 %v1207, %v1206
    %v1214 = vpack.c.b16 %v1209, %v1208
    %v1215 = vpack.c.b16 %v1211, %v1210
    %v1220 = vunpack.c.l.b16 %v1073
    %v1221 = vunpack.c.l.b16 %v1087
    %v1222 = vunpack.c.l.b16 %v1101
    %v1223 = vunpack.c.l.b16 %v1115
    %v1224 = vunpack.c.l.b16 %v1129
    %v1225 = vunpack.c.l.b16 %v1143
    %v1226 = vunpack.c.l.b16 %v1157
    %v1227 = vunpack.c.l.b16 %v1171
    %v1228 = vpack.c.b16 %v1221, %v1220
    %v1229 = vpack.c.b16 %v1223, %v1222
    %v1230 = vpack.c.b16 %v1225, %v1224
    %v1231 = vpack.c.b16 %v1227, %v1226
    %v1236 = vld [vmem:[%s1] sm:$0xf]
    %v1237 = vld [vmem:[%s1 + $0x4] sm:$0xf]
    %v1238 = vld [vmem:[%s1 + $0x8] sm:$0xf]
    %v1239 = vld [vmem:[%s1 + $0xc] sm:$0xf]
    %v1240 = vld [vmem:[%s1 + $0x10] sm:$0xf]
    %v1241 = vld [vmem:[%s1 + $0x14] sm:$0xf]
    %v1242 = vld [vmem:[%s1 + $0x18] sm:$0xf]
    %v1243 = vld [vmem:[%s1 + $0x1c] sm:$0xf]
    %v1244 = vld [vmem:[%s1 + $0x20] sm:$0xf]
    %v1245 = vld [vmem:[%s1 + $0x24] sm:$0xf]
    %v1246 = vld [vmem:[%s1 + $0x28] sm:$0xf]
    %v1247 = vld [vmem:[%s1 + $0x2c] sm:$0xf]
    %v1248 = vld [vmem:[%s1 + $0x30] sm:$0xf]
    %v1249 = vld [vmem:[%s1 + $0x34] sm:$0xf]
    %v1250 = vld [vmem:[%s1 + $0x38] sm:$0xf]
    %v1251 = vld [vmem:[%s1 + $0x3c] sm:$0xf]
    %v1252 = vld [vmem:[%s1 + $0x40] sm:$0xf]
    %v1253 = vld [vmem:[%s1 + $0x44] sm:$0xf]
    %v1254 = vld [vmem:[%s1 + $0x48] sm:$0xf]
    %v1255 = vld [vmem:[%s1 + $0x4c] sm:$0xf]
    %v1256 = vld [vmem:[%s1 + $0x50] sm:$0xf]
    %v1257 = vld [vmem:[%s1 + $0x54] sm:$0xf]
    %v1258 = vld [vmem:[%s1 + $0x58] sm:$0xf]
    %v1259 = vld [vmem:[%s1 + $0x5c] sm:$0xf]
    %v1260 = vld [vmem:[%s1 + $0x60] sm:$0xf]
    %v1261 = vld [vmem:[%s1 + $0x64] sm:$0xf]
    %v1262 = vld [vmem:[%s1 + $0x68] sm:$0xf]
    %v1263 = vld [vmem:[%s1 + $0x6c] sm:$0xf]
    %v1264 = vld [vmem:[%s1 + $0x70] sm:$0xf]
    %v1265 = vld [vmem:[%s1 + $0x74] sm:$0xf]
    %v1266 = vld [vmem:[%s1 + $0x78] sm:$0xf]
    %v1267 = vld [vmem:[%s1 + $0x7c] sm:$0xf]
    %v1268 = vld [vmem:[%s1 + $0x80] sm:$0xf]
    %v1269 = vld [vmem:[%s1 + $0x84] sm:$0xf]
    %v1270 = vld [vmem:[%s1 + $0x88] sm:$0xf]
    %v1271 = vld [vmem:[%s1 + $0x8c] sm:$0xf]
    %v1272 = vld [vmem:[%s1 + $0x90] sm:$0xf]
    %v1273 = vld [vmem:[%s1 + $0x94] sm:$0xf]
    %v1274 = vld [vmem:[%s1 + $0x98] sm:$0xf]
    %v1275 = vld [vmem:[%s1 + $0x9c] sm:$0xf]
    %v1276 = vld [vmem:[%s1 + $0xa0] sm:$0xf]
    %v1277 = vld [vmem:[%s1 + $0xa4] sm:$0xf]
    %v1278 = vld [vmem:[%s1 + $0xa8] sm:$0xf]
    %v1279 = vld [vmem:[%s1 + $0xac] sm:$0xf]
    %v1280 = vld [vmem:[%s1 + $0xb0] sm:$0xf]
    %v1281 = vld [vmem:[%s1 + $0xb4] sm:$0xf]
    %v1282 = vld [vmem:[%s1 + $0xb8] sm:$0xf]
    %v1283 = vld [vmem:[%s1 + $0xbc] sm:$0xf]
    %v1284 = vld [vmem:[%s2] sm:$0xff]
    %v1285 = vld [vmem:[%s2 + $0x8] sm:$0xff]
    %v1286 = vld [vmem:[%s2 + $0x10] sm:$0xff]
    %v1287 = vld [vmem:[%s2 + $0x18] sm:$0xff]
    %v1288 = vld [vmem:[%s2 + $0x20] sm:$0xff]
    %v1289 = vld [vmem:[%s2 + $0x28] sm:$0xff]
    %v1290 = vld [vmem:[%s2 + $0x30] sm:$0xff]
    %v1291 = vld [vmem:[%s2 + $0x38] sm:$0xff]
    %v1292 = vld [vmem:[%s2 + $0x40] sm:$0xff]
    %v1293 = vld [vmem:[%s2 + $0x48] sm:$0xff]
    %v1294 = vld [vmem:[%s2 + $0x50] sm:$0xff]
    %v1295 = vld [vmem:[%s2 + $0x58] sm:$0xff]
    %v1296 = vld [vmem:[%s2 + $0x60] sm:$0xff]
    %v1297 = vld [vmem:[%s2 + $0x68] sm:$0xff]
    %v1298 = vld [vmem:[%s2 + $0x70] sm:$0xff]
    %v1299 = vld [vmem:[%s2 + $0x78] sm:$0xff]
    %v1300 = vld [vmem:[%s2 + $0x80] sm:$0xff]
    %v1301 = vld [vmem:[%s2 + $0x88] sm:$0xff]
    %v1302 = vld [vmem:[%s2 + $0x90] sm:$0xff]
    %v1303 = vld [vmem:[%s2 + $0x98] sm:$0xff]
    %v1304 = vld [vmem:[%s2 + $0xa0] sm:$0xff]
    %v1305 = vld [vmem:[%s2 + $0xa8] sm:$0xff]
    %v1306 = vld [vmem:[%s2 + $0xb0] sm:$0xff]
    %v1307 = vld [vmem:[%s2 + $0xb8] sm:$0xff]
    %v1308 = vld [vmem:[%s2 + $0xc0] sm:$0xff]
    %v1309 = vld [vmem:[%s2 + $0xc8] sm:$0xff]
    %v1310 = vld [vmem:[%s2 + $0xd0] sm:$0xff]
    %v1311 = vld [vmem:[%s2 + $0xd8] sm:$0xff]
    %v1312 = vld [vmem:[%s2 + $0xe0] sm:$0xff]
    %v1313 = vld [vmem:[%s2 + $0xe8] sm:$0xff]
    %v1314 = vld [vmem:[%s2 + $0xf0] sm:$0xff]
    %v1315 = vld [vmem:[%s2 + $0xf8] sm:$0xff]
    %v1316 = vld [vmem:[%s2 + $0x100] sm:$0xff]
    %v1317 = vld [vmem:[%s2 + $0x108] sm:$0xff]
    %v1318 = vld [vmem:[%s2 + $0x110] sm:$0xff]
    %v1319 = vld [vmem:[%s2 + $0x118] sm:$0xff]
    %v1320 = vld [vmem:[%s2 + $0x120] sm:$0xff]
    %v1321 = vld [vmem:[%s2 + $0x128] sm:$0xff]
    %v1322 = vld [vmem:[%s2 + $0x130] sm:$0xff]
    %v1323 = vld [vmem:[%s2 + $0x138] sm:$0xff]
    %v1324 = vld [vmem:[%s2 + $0x140] sm:$0xff]
    %v1325 = vld [vmem:[%s2 + $0x148] sm:$0xff]
    %v1326 = vld [vmem:[%s2 + $0x150] sm:$0xff]
    %v1327 = vld [vmem:[%s2 + $0x158] sm:$0xff]
    %v1328 = vld [vmem:[%s2 + $0x160] sm:$0xff]
    %v1329 = vld [vmem:[%s2 + $0x168] sm:$0xff]
    %v1330 = vld [vmem:[%s2 + $0x170] sm:$0xff]
    %v1331 = vld [vmem:[%s2 + $0x178] sm:$0xff]
    %v1380 = vunpack.c.l.b16 %v1284
    %v1381 = vunpack.c.h.b16 %v1284
    %v1382 = vunpack.c.l.b16 %v1285
    %v1383 = vunpack.c.h.b16 %v1285
    %v1384 = vunpack.c.l.b16 %v1286
    %v1385 = vunpack.c.h.b16 %v1286
    %v1386 = vunpack.c.l.b16 %v1287
    %v1387 = vunpack.c.h.b16 %v1287
    %v1388 = vunpack.c.l.b16 %v1288
    %v1389 = vunpack.c.h.b16 %v1288
    %v1390 = vunpack.c.l.b16 %v1289
    %v1391 = vunpack.c.h.b16 %v1289
    %v1392 = vunpack.c.l.b16 %v1290
    %v1393 = vunpack.c.h.b16 %v1290
    %v1394 = vunpack.c.l.b16 %v1291
    %v1395 = vunpack.c.h.b16 %v1291
    %v1396 = vunpack.c.l.b16 %v1292
    %v1397 = vunpack.c.h.b16 %v1292
    %v1398 = vunpack.c.l.b16 %v1293
    %v1399 = vunpack.c.h.b16 %v1293
    %v1400 = vunpack.c.l.b16 %v1294
    %v1401 = vunpack.c.h.b16 %v1294
    %v1402 = vunpack.c.l.b16 %v1295
    %v1403 = vunpack.c.h.b16 %v1295
    %v1404 = vunpack.c.l.b16 %v1296
    %v1405 = vunpack.c.h.b16 %v1296
    %v1406 = vunpack.c.l.b16 %v1297
    %v1407 = vunpack.c.h.b16 %v1297
    %v1408 = vunpack.c.l.b16 %v1298
    %v1409 = vunpack.c.h.b16 %v1298
    %v1410 = vunpack.c.l.b16 %v1299
    %v1411 = vunpack.c.h.b16 %v1299
    %v1412 = vunpack.c.l.b16 %v1300
    %v1413 = vunpack.c.h.b16 %v1300
    %v1414 = vunpack.c.l.b16 %v1301
    %v1415 = vunpack.c.h.b16 %v1301
    %v1416 = vunpack.c.l.b16 %v1302
    %v1417 = vunpack.c.h.b16 %v1302
    %v1418 = vunpack.c.l.b16 %v1303
    %v1419 = vunpack.c.h.b16 %v1303
    %v1420 = vunpack.c.l.b16 %v1304
    %v1421 = vunpack.c.h.b16 %v1304
    %v1422 = vunpack.c.l.b16 %v1305
    %v1423 = vunpack.c.h.b16 %v1305
    %v1424 = vunpack.c.l.b16 %v1306
    %v1425 = vunpack.c.h.b16 %v1306
    %v1426 = vunpack.c.l.b16 %v1307
    %v1427 = vunpack.c.h.b16 %v1307
    %v1428 = vunpack.c.l.b16 %v1308
    %v1429 = vunpack.c.h.b16 %v1308
    %v1430 = vunpack.c.l.b16 %v1309
    %v1431 = vunpack.c.h.b16 %v1309
    %v1432 = vunpack.c.l.b16 %v1310
    %v1433 = vunpack.c.h.b16 %v1310
    %v1434 = vunpack.c.l.b16 %v1311
    %v1435 = vunpack.c.h.b16 %v1311
    %v1436 = vunpack.c.l.b16 %v1312
    %v1437 = vunpack.c.h.b16 %v1312
    %v1438 = vunpack.c.l.b16 %v1313
    %v1439 = vunpack.c.h.b16 %v1313
    %v1440 = vunpack.c.l.b16 %v1314
    %v1441 = vunpack.c.h.b16 %v1314
    %v1442 = vunpack.c.l.b16 %v1315
    %v1443 = vunpack.c.h.b16 %v1315
    %v1444 = vunpack.c.l.b16 %v1316
    %v1445 = vunpack.c.h.b16 %v1316
    %v1446 = vunpack.c.l.b16 %v1317
    %v1447 = vunpack.c.h.b16 %v1317
    %v1448 = vunpack.c.l.b16 %v1318
    %v1449 = vunpack.c.h.b16 %v1318
    %v1450 = vunpack.c.l.b16 %v1319
    %v1451 = vunpack.c.h.b16 %v1319
    %v1452 = vunpack.c.l.b16 %v1320
    %v1453 = vunpack.c.h.b16 %v1320
    %v1454 = vunpack.c.l.b16 %v1321
    %v1455 = vunpack.c.h.b16 %v1321
    %v1456 = vunpack.c.l.b16 %v1322
    %v1457 = vunpack.c.h.b16 %v1322
    %v1458 = vunpack.c.l.b16 %v1323
    %v1459 = vunpack.c.h.b16 %v1323
    %v1460 = vunpack.c.l.b16 %v1324
    %v1461 = vunpack.c.h.b16 %v1324
    %v1462 = vunpack.c.l.b16 %v1325
    %v1463 = vunpack.c.h.b16 %v1325
    %v1464 = vunpack.c.l.b16 %v1326
    %v1465 = vunpack.c.h.b16 %v1326
    %v1466 = vunpack.c.l.b16 %v1327
    %v1467 = vunpack.c.h.b16 %v1327
    %v1468 = vunpack.c.l.b16 %v1328
    %v1469 = vunpack.c.h.b16 %v1328
    %v1470 = vunpack.c.l.b16 %v1329
    %v1471 = vunpack.c.h.b16 %v1329
    %v1472 = vunpack.c.l.b16 %v1330
    %v1473 = vunpack.c.h.b16 %v1330
    %v1474 = vunpack.c.l.b16 %v1331
    %v1475 = vunpack.c.h.b16 %v1331
    %v1476 = vpack.c.b16 %v1382, %v1380
    %v1477 = vpack.c.b16 %v1383, %v1381
    %v1478 = vpack.c.b16 %v1386, %v1384
    %v1479 = vpack.c.b16 %v1387, %v1385
    %v1480 = vpack.c.b16 %v1390, %v1388
    %v1481 = vpack.c.b16 %v1391, %v1389
    %v1482 = vpack.c.b16 %v1394, %v1392
    %v1483 = vpack.c.b16 %v1395, %v1393
    %v1484 = vpack.c.b16 %v1398, %v1396
    %v1485 = vpack.c.b16 %v1399, %v1397
    %v1486 = vpack.c.b16 %v1402, %v1400
    %v1487 = vpack.c.b16 %v1403, %v1401
    %v1488 = vpack.c.b16 %v1406, %v1404
    %v1489 = vpack.c.b16 %v1407, %v1405
    %v1490 = vpack.c.b16 %v1410, %v1408
    %v1491 = vpack.c.b16 %v1411, %v1409
    %v1492 = vpack.c.b16 %v1414, %v1412
    %v1493 = vpack.c.b16 %v1415, %v1413
    %v1494 = vpack.c.b16 %v1418, %v1416
    %v1495 = vpack.c.b16 %v1419, %v1417
    %v1496 = vpack.c.b16 %v1422, %v1420
    %v1497 = vpack.c.b16 %v1423, %v1421
    %v1498 = vpack.c.b16 %v1426, %v1424
    %v1499 = vpack.c.b16 %v1427, %v1425
    %v1500 = vpack.c.b16 %v1430, %v1428
    %v1501 = vpack.c.b16 %v1431, %v1429
    %v1502 = vpack.c.b16 %v1434, %v1432
    %v1503 = vpack.c.b16 %v1435, %v1433
    %v1504 = vpack.c.b16 %v1438, %v1436
    %v1505 = vpack.c.b16 %v1439, %v1437
    %v1506 = vpack.c.b16 %v1442, %v1440
    %v1507 = vpack.c.b16 %v1443, %v1441
    %v1508 = vpack.c.b16 %v1446, %v1444
    %v1509 = vpack.c.b16 %v1447, %v1445
    %v1510 = vpack.c.b16 %v1450, %v1448
    %v1511 = vpack.c.b16 %v1451, %v1449
    %v1512 = vpack.c.b16 %v1454, %v1452
    %v1513 = vpack.c.b16 %v1455, %v1453
    %v1514 = vpack.c.b16 %v1458, %v1456
    %v1515 = vpack.c.b16 %v1459, %v1457
    %v1516 = vpack.c.b16 %v1462, %v1460
    %v1517 = vpack.c.b16 %v1463, %v1461
    %v1518 = vpack.c.b16 %v1466, %v1464
    %v1519 = vpack.c.b16 %v1467, %v1465
    %v1520 = vpack.c.b16 %v1470, %v1468
    %v1521 = vpack.c.b16 %v1471, %v1469
    %v1522 = vpack.c.b16 %v1474, %v1472
    %v1523 = vpack.c.b16 %v1475, %v1473
    %1572 = vmatpush.bf16.msra.mxu0 %v1490
    %1573 = vmatpush.bf16.msra.mxu0 %v1488
    %1574 = vmatpush.bf16.msra.mxu0 %v1486
    %1575 = vmatpush.bf16.msra.mxu0 %v1484
    %1576 = vmatpush.bf16.msra.mxu0 %v1482
    %1577 = vmatpush.bf16.msra.mxu0 %v1480
    %1578 = vmatpush.bf16.msra.mxu0 %v1478
    %1579 = vmatpush.bf16.msra.mxu0 %v1476
    %1580 = vmatmul.bf16.gmra.mxu0 %v582
    %v1581 = vpop.f32.mrf.mxu0
    %v1582 = vadd.f32 0.0, %v1581
    %v1583 = vpop.f32.mrf.mxu0
    %v1584 = vadd.f32 0.0, %v1583
    %1585 = vmatmul.bf16.gmra.mxu0 %v583
    %v1586 = vpop.f32.mrf.mxu0
    %v1587 = vadd.f32 0.0, %v1586
    %v1588 = vpop.f32.mrf.mxu0
    %v1589 = vadd.f32 0.0, %v1588
    %1590 = vmatmul.bf16.gmra.mxu0 %v584
    %v1591 = vpop.f32.mrf.mxu0
    %v1592 = vadd.f32 0.0, %v1591
    %v1593 = vpop.f32.mrf.mxu0
    %v1594 = vadd.f32 0.0, %v1593
    %1595 = vmatmul.bf16.gmra.mxu0 %v585
    %v1596 = vpop.f32.mrf.mxu0
    %v1597 = vadd.f32 0.0, %v1596
    %v1598 = vpop.f32.mrf.mxu0
    %v1599 = vadd.f32 0.0, %v1598
    %1600 = vmatmul.bf16.gmra.mxu0 %v784
    %v1601 = vpop.f32.mrf.mxu0
    %v1602 = vadd.f32 0.0, %v1601
    %v1603 = vpop.f32.mrf.mxu0
    %v1604 = vadd.f32 0.0, %v1603
    %1605 = vmatmul.bf16.gmra.mxu0 %v785
    %v1606 = vpop.f32.mrf.mxu0
    %v1607 = vadd.f32 0.0, %v1606
    %v1608 = vpop.f32.mrf.mxu0
    %v1609 = vadd.f32 0.0, %v1608
    %1610 = vmatmul.bf16.gmra.mxu0 %v786
    %v1611 = vpop.f32.mrf.mxu0
    %v1612 = vadd.f32 0.0, %v1611
    %v1613 = vpop.f32.mrf.mxu0
    %v1614 = vadd.f32 0.0, %v1613
    %1615 = vmatmul.bf16.gmra.mxu0 %v787
    %v1616 = vpop.f32.mrf.mxu0
    %v1617 = vadd.f32 0.0, %v1616
    %v1618 = vpop.f32.mrf.mxu0
    %v1619 = vadd.f32 0.0, %v1618
    %1620 = vdwg.mxu0
    %1621 = vmatpush.bf16.msra.mxu0 %v1506
    %1622 = vmatpush.bf16.msra.mxu0 %v1504
    %1623 = vmatpush.bf16.msra.mxu0 %v1502
    %1624 = vmatpush.bf16.msra.mxu0 %v1500
    %1625 = vmatpush.bf16.msra.mxu0 %v1498
    %1626 = vmatpush.bf16.msra.mxu0 %v1496
    %1627 = vmatpush.bf16.msra.mxu0 %v1494
    %1628 = vmatpush.bf16.msra.mxu0 %v1492
    %1629 = vmatmul.bf16.gmra.mxu0 %v606
    %v1630 = vpop.f32.mrf.mxu0
    %v1631 = vadd.f32 %v1582, %v1630
    %v1632 = vpop.f32.mrf.mxu0
    %v1633 = vadd.f32 %v1584, %v1632
    %1634 = vmatmul.bf16.gmra.mxu0 %v607
    %v1635 = vpop.f32.mrf.mxu0
    %v1636 = vadd.f32 %v1587, %v1635
    %v1637 = vpop.f32.mrf.mxu0
    %v1638 = vadd.f32 %v1589, %v1637
    %1639 = vmatmul.bf16.gmra.mxu0 %v608
    %v1640 = vpop.f32.mrf.mxu0
    %v1641 = vadd.f32 %v1592, %v1640
    %v1642 = vpop.f32.mrf.mxu0
    %v1643 = vadd.f32 %v1594, %v1642
    %1644 = vmatmul.bf16.gmra.mxu0 %v609
    %v1645 = vpop.f32.mrf.mxu0
    %v1646 = vadd.f32 %v1597, %v1645
    %v1647 = vpop.f32.mrf.mxu0
    %v1648 = vadd.f32 %v1599, %v1647
    %1649 = vmatmul.bf16.gmra.mxu0 %v808
    %v1650 = vpop.f32.mrf.mxu0
    %v1651 = vadd.f32 %v1602, %v1650
    %v1652 = vpop.f32.mrf.mxu0
    %v1653 = vadd.f32 %v1604, %v1652
    %1654 = vmatmul.bf16.gmra.mxu0 %v809
    %v1655 = vpop.f32.mrf.mxu0
    %v1656 = vadd.f32 %v1607, %v1655
    %v1657 = vpop.f32.mrf.mxu0
    %v1658 = vadd.f32 %v1609, %v1657
    %1659 = vmatmul.bf16.gmra.mxu0 %v810
    %v1660 = vpop.f32.mrf.mxu0
    %v1661 = vadd.f32 %v1612, %v1660
    %v1662 = vpop.f32.mrf.mxu0
    %v1663 = vadd.f32 %v1614, %v1662
    %1664 = vmatmul.bf16.gmra.mxu0 %v811
    %v1665 = vpop.f32.mrf.mxu0
    %v1666 = vadd.f32 %v1617, %v1665
    %v1667 = vpop.f32.mrf.mxu0
    %v1668 = vadd.f32 %v1619, %v1667
    %1669 = vdwg.mxu0
    %1670 = vmatpush.bf16.msra.mxu0 %v1522
    %1671 = vmatpush.bf16.msra.mxu0 %v1520
    %1672 = vmatpush.bf16.msra.mxu0 %v1518
    %1673 = vmatpush.bf16.msra.mxu0 %v1516
    %1674 = vmatpush.bf16.msra.mxu0 %v1514
    %1675 = vmatpush.bf16.msra.mxu0 %v1512
    %1676 = vmatpush.bf16.msra.mxu0 %v1510
    %1677 = vmatpush.bf16.msra.mxu0 %v1508
    %1678 = vmatmul.bf16.gmra.mxu0 %v622
    %v1679 = vpop.f32.mrf.mxu0
    %v1680 = vadd.f32 %v1631, %v1679
    %v1681 = vpop.f32.mrf.mxu0
    %v1682 = vadd.f32 %v1633, %v1681
    %1683 = vmatmul.bf16.gmra.mxu0 %v623
    %v1684 = vpop.f32.mrf.mxu0
    %v1685 = vadd.f32 %v1636, %v1684
    %v1686 = vpop.f32.mrf.mxu0
    %v1687 = vadd.f32 %v1638, %v1686
    %1688 = vmatmul.bf16.gmra.mxu0 %v624
    %v1689 = vpop.f32.mrf.mxu0
    %v1690 = vadd.f32 %v1641, %v1689
    %v1691 = vpop.f32.mrf.mxu0
    %v1692 = vadd.f32 %v1643, %v1691
    %1693 = vmatmul.bf16.gmra.mxu0 %v625
    %v1694 = vpop.f32.mrf.mxu0
    %v1695 = vadd.f32 %v1646, %v1694
    %v1696 = vpop.f32.mrf.mxu0
    %v1697 = vadd.f32 %v1648, %v1696
    %1698 = vmatmul.bf16.gmra.mxu0 %v824
    %v1699 = vpop.f32.mrf.mxu0
    %v1700 = vadd.f32 %v1651, %v1699
    %v1701 = vpop.f32.mrf.mxu0
    %v1702 = vadd.f32 %v1653, %v1701
    %1703 = vmatmul.bf16.gmra.mxu0 %v825
    %v1704 = vpop.f32.mrf.mxu0
    %v1705 = vadd.f32 %v1656, %v1704
    %v1706 = vpop.f32.mrf.mxu0
    %v1707 = vadd.f32 %v1658, %v1706
    %1708 = vmatmul.bf16.gmra.mxu0 %v826
    %v1709 = vpop.f32.mrf.mxu0
    %v1710 = vadd.f32 %v1661, %v1709
    %v1711 = vpop.f32.mrf.mxu0
    %v1712 = vadd.f32 %v1663, %v1711
    %1713 = vmatmul.bf16.gmra.mxu0 %v827
    %v1714 = vpop.f32.mrf.mxu0
    %v1715 = vadd.f32 %v1666, %v1714
    %v1716 = vpop.f32.mrf.mxu0
    %v1717 = vadd.f32 %v1668, %v1716
    %1718 = vdwg.mxu0
    %1719 = vmatpush.bf16.msra.mxu0 %v1491
    %1720 = vmatpush.bf16.msra.mxu0 %v1489
    %1721 = vmatpush.bf16.msra.mxu0 %v1487
    %1722 = vmatpush.bf16.msra.mxu0 %v1485
    %1723 = vmatpush.bf16.msra.mxu0 %v1483
    %1724 = vmatpush.bf16.msra.mxu0 %v1481
    %1725 = vmatpush.bf16.msra.mxu0 %v1479
    %1726 = vmatpush.bf16.msra.mxu0 %v1477
    %1727 = vmatmul.bf16.gmra.mxu0 %v582
    %v1728 = vpop.f32.mrf.mxu0
    %v1729 = vadd.f32 0.0, %v1728
    %v1730 = vpop.f32.mrf.mxu0
    %v1731 = vadd.f32 0.0, %v1730
    %1732 = vmatmul.bf16.gmra.mxu0 %v583
    %v1733 = vpop.f32.mrf.mxu0
    %v1734 = vadd.f32 0.0, %v1733
    %v1735 = vpop.f32.mrf.mxu0
    %v1736 = vadd.f32 0.0, %v1735
    %1737 = vmatmul.bf16.gmra.mxu0 %v584
    %v1738 = vpop.f32.mrf.mxu0
    %v1739 = vadd.f32 0.0, %v1738
    %v1740 = vpop.f32.mrf.mxu0
    %v1741 = vadd.f32 0.0, %v1740
    %1742 = vmatmul.bf16.gmra.mxu0 %v585
    %v1743 = vpop.f32.mrf.mxu0
    %v1744 = vadd.f32 0.0, %v1743
    %v1745 = vpop.f32.mrf.mxu0
    %v1746 = vadd.f32 0.0, %v1745
    %1747 = vmatmul.bf16.gmra.mxu0 %v784
    %v1748 = vpop.f32.mrf.mxu0
    %v1749 = vadd.f32 0.0, %v1748
    %v1750 = vpop.f32.mrf.mxu0
    %v1751 = vadd.f32 0.0, %v1750
    %1752 = vmatmul.bf16.gmra.mxu0 %v785
    %v1753 = vpop.f32.mrf.mxu0
    %v1754 = vadd.f32 0.0, %v1753
    %v1755 = vpop.f32.mrf.mxu0
    %v1756 = vadd.f32 0.0, %v1755
    %1757 = vmatmul.bf16.gmra.mxu0 %v786
    %v1758 = vpop.f32.mrf.mxu0
    %v1759 = vadd.f32 0.0, %v1758
    %v1760 = vpop.f32.mrf.mxu0
    %v1761 = vadd.f32 0.0, %v1760
    %1762 = vmatmul.bf16.gmra.mxu0 %v787
    %v1763 = vpop.f32.mrf.mxu0
    %v1764 = vadd.f32 0.0, %v1763
    %v1765 = vpop.f32.mrf.mxu0
    %v1766 = vadd.f32 0.0, %v1765
    %1767 = vdwg.mxu0
    %1768 = vmatpush.bf16.msra.mxu0 %v1507
    %1769 = vmatpush.bf16.msra.mxu0 %v1505
    %1770 = vmatpush.bf16.msra.mxu0 %v1503
    %1771 = vmatpush.bf16.msra.mxu0 %v1501
    %1772 = vmatpush.bf16.msra.mxu0 %v1499
    %1773 = vmatpush.bf16.msra.mxu0 %v1497
    %1774 = vmatpush.bf16.msra.mxu0 %v1495
    %1775 = vmatpush.bf16.msra.mxu0 %v1493
    %1776 = vmatmul.bf16.gmra.mxu0 %v606
    %v1777 = vpop.f32.mrf.mxu0
    %v1778 = vadd.f32 %v1729, %v1777
    %v1779 = vpop.f32.mrf.mxu0
    %v1780 = vadd.f32 %v1731, %v1779
    %1781 = vmatmul.bf16.gmra.mxu0 %v607
    %v1782 = vpop.f32.mrf.mxu0
    %v1783 = vadd.f32 %v1734, %v1782
    %v1784 = vpop.f32.mrf.mxu0
    %v1785 = vadd.f32 %v1736, %v1784
    %1786 = vmatmul.bf16.gmra.mxu0 %v608
    %v1787 = vpop.f32.mrf.mxu0
    %v1788 = vadd.f32 %v1739, %v1787
    %v1789 = vpop.f32.mrf.mxu0
    %v1790 = vadd.f32 %v1741, %v1789
    %1791 = vmatmul.bf16.gmra.mxu0 %v609
    %v1792 = vpop.f32.mrf.mxu0
    %v1793 = vadd.f32 %v1744, %v1792
    %v1794 = vpop.f32.mrf.mxu0
    %v1795 = vadd.f32 %v1746, %v1794
    %1796 = vmatmul.bf16.gmra.mxu0 %v808
    %v1797 = vpop.f32.mrf.mxu0
    %v1798 = vadd.f32 %v1749, %v1797
    %v1799 = vpop.f32.mrf.mxu0
    %v1800 = vadd.f32 %v1751, %v1799
    %1801 = vmatmul.bf16.gmra.mxu0 %v809
    %v1802 = vpop.f32.mrf.mxu0
    %v1803 = vadd.f32 %v1754, %v1802
    %v1804 = vpop.f32.mrf.mxu0
    %v1805 = vadd.f32 %v1756, %v1804
    %1806 = vmatmul.bf16.gmra.mxu0 %v810
    %v1807 = vpop.f32.mrf.mxu0
    %v1808 = vadd.f32 %v1759, %v1807
    %v1809 = vpop.f32.mrf.mxu0
    %v1810 = vadd.f32 %v1761, %v1809
    %1811 = vmatmul.bf16.gmra.mxu0 %v811
    %v1812 = vpop.f32.mrf.mxu0
    %v1813 = vadd.f32 %v1764, %v1812
    %v1814 = vpop.f32.mrf.mxu0
    %v1815 = vadd.f32 %v1766, %v1814
    %1816 = vdwg.mxu0
    %1817 = vmatpush.bf16.msra.mxu0 %v1523
    %1818 = vmatpush.bf16.msra.mxu0 %v1521
    %1819 = vmatpush.bf16.msra.mxu0 %v1519
    %1820 = vmatpush.bf16.msra.mxu0 %v1517
    %1821 = vmatpush.bf16.msra.mxu0 %v1515
    %1822 = vmatpush.bf16.msra.mxu0 %v1513
    %1823 = vmatpush.bf16.msra.mxu0 %v1511
    %1824 = vmatpush.bf16.msra.mxu0 %v1509
    %1825 = vmatmul.bf16.gmra.mxu0 %v622
    %v1826 = vpop.f32.mrf.mxu0
    %v1827 = vadd.f32 %v1778, %v1826
    %v1828 = vpop.f32.mrf.mxu0
    %v1829 = vadd.f32 %v1780, %v1828
    %1830 = vmatmul.bf16.gmra.mxu0 %v623
    %v1831 = vpop.f32.mrf.mxu0
    %v1832 = vadd.f32 %v1783, %v1831
    %v1833 = vpop.f32.mrf.mxu0
    %v1834 = vadd.f32 %v1785, %v1833
    %1835 = vmatmul.bf16.gmra.mxu0 %v624
    %v1836 = vpop.f32.mrf.mxu0
    %v1837 = vadd.f32 %v1788, %v1836
    %v1838 = vpop.f32.mrf.mxu0
    %v1839 = vadd.f32 %v1790, %v1838
    %1840 = vmatmul.bf16.gmra.mxu0 %v625
    %v1841 = vpop.f32.mrf.mxu0
    %v1842 = vadd.f32 %v1793, %v1841
    %v1843 = vpop.f32.mrf.mxu0
    %v1844 = vadd.f32 %v1795, %v1843
    %1845 = vmatmul.bf16.gmra.mxu0 %v824
    %v1846 = vpop.f32.mrf.mxu0
    %v1847 = vadd.f32 %v1798, %v1846
    %v1848 = vpop.f32.mrf.mxu0
    %v1849 = vadd.f32 %v1800, %v1848
    %1850 = vmatmul.bf16.gmra.mxu0 %v825
    %v1851 = vpop.f32.mrf.mxu0
    %v1852 = vadd.f32 %v1803, %v1851
    %v1853 = vpop.f32.mrf.mxu0
    %v1854 = vadd.f32 %v1805, %v1853
    %1855 = vmatmul.bf16.gmra.mxu0 %v826
    %v1856 = vpop.f32.mrf.mxu0
    %v1857 = vadd.f32 %v1808, %v1856
    %v1858 = vpop.f32.mrf.mxu0
    %v1859 = vadd.f32 %v1810, %v1858
    %1860 = vmatmul.bf16.gmra.mxu0 %v827
    %v1861 = vpop.f32.mrf.mxu0
    %v1862 = vadd.f32 %v1813, %v1861
    %v1863 = vpop.f32.mrf.mxu0
    %v1864 = vadd.f32 %v1815, %v1863
    %1865 = vdwg.mxu0
    %v1914 = vunpack.c.l.b16 %v1236
    %v1915 = vunpack.c.l.b16 %v1237
    %v1916 = vunpack.c.l.b16 %v1238
    %v1917 = vunpack.c.l.b16 %v1239
    %v1918 = vunpack.c.l.b16 %v1240
    %v1919 = vunpack.c.l.b16 %v1241
    %v1920 = vunpack.c.l.b16 %v1242
    %v1921 = vunpack.c.l.b16 %v1243
    %v1922 = vunpack.c.l.b16 %v1244
    %v1923 = vunpack.c.l.b16 %v1245
    %v1924 = vunpack.c.l.b16 %v1246
    %v1925 = vunpack.c.l.b16 %v1247
    %v1926 = vunpack.c.l.b16 %v1248
    %v1927 = vunpack.c.l.b16 %v1249
    %v1928 = vunpack.c.l.b16 %v1250
    %v1929 = vunpack.c.l.b16 %v1251
    %v1930 = vunpack.c.l.b16 %v1252
    %v1931 = vunpack.c.l.b16 %v1253
    %v1932 = vunpack.c.l.b16 %v1254
    %v1933 = vunpack.c.l.b16 %v1255
    %v1934 = vunpack.c.l.b16 %v1256
    %v1935 = vunpack.c.l.b16 %v1257
    %v1936 = vunpack.c.l.b16 %v1258
    %v1937 = vunpack.c.l.b16 %v1259
    %v1938 = vunpack.c.l.b16 %v1260
    %v1939 = vunpack.c.l.b16 %v1261
    %v1940 = vunpack.c.l.b16 %v1262
    %v1941 = vunpack.c.l.b16 %v1263
    %v1942 = vunpack.c.l.b16 %v1264
    %v1943 = vunpack.c.l.b16 %v1265
    %v1944 = vunpack.c.l.b16 %v1266
    %v1945 = vunpack.c.l.b16 %v1267
    %v1946 = vunpack.c.l.b16 %v1268
    %v1947 = vunpack.c.l.b16 %v1269
    %v1948 = vunpack.c.l.b16 %v1270
    %v1949 = vunpack.c.l.b16 %v1271
    %v1950 = vunpack.c.l.b16 %v1272
    %v1951 = vunpack.c.l.b16 %v1273
    %v1952 = vunpack.c.l.b16 %v1274
    %v1953 = vunpack.c.l.b16 %v1275
    %v1954 = vunpack.c.l.b16 %v1276
    %v1955 = vunpack.c.l.b16 %v1277
    %v1956 = vunpack.c.l.b16 %v1278
    %v1957 = vunpack.c.l.b16 %v1279
    %v1958 = vunpack.c.l.b16 %v1280
    %v1959 = vunpack.c.l.b16 %v1281
    %v1960 = vunpack.c.l.b16 %v1282
    %v1961 = vunpack.c.l.b16 %v1283
    %v1962 = vpack.c.b16 %v1915, %v1914
    %v1963 = vpack.c.b16 %v1917, %v1916
    %v1964 = vpack.c.b16 %v1919, %v1918
    %v1965 = vpack.c.b16 %v1921, %v1920
    %v1966 = vpack.c.b16 %v1923, %v1922
    %v1967 = vpack.c.b16 %v1925, %v1924
    %v1968 = vpack.c.b16 %v1927, %v1926
    %v1969 = vpack.c.b16 %v1929, %v1928
    %v1970 = vpack.c.b16 %v1931, %v1930
    %v1971 = vpack.c.b16 %v1933, %v1932
    %v1972 = vpack.c.b16 %v1935, %v1934
    %v1973 = vpack.c.b16 %v1937, %v1936
    %v1974 = vpack.c.b16 %v1939, %v1938
    %v1975 = vpack.c.b16 %v1941, %v1940
    %v1976 = vpack.c.b16 %v1943, %v1942
    %v1977 = vpack.c.b16 %v1945, %v1944
    %v1978 = vpack.c.b16 %v1947, %v1946
    %v1979 = vpack.c.b16 %v1949, %v1948
    %v1980 = vpack.c.b16 %v1951, %v1950
    %v1981 = vpack.c.b16 %v1953, %v1952
    %v1982 = vpack.c.b16 %v1955, %v1954
    %v1983 = vpack.c.b16 %v1957, %v1956
    %v1984 = vpack.c.b16 %v1959, %v1958
    %v1985 = vpack.c.b16 %v1961, %v1960
    %2010 = vmatpush.bf16.msra.mxu0 %v1969
    %2011 = vmatpush.bf16.msra.mxu0 %v1968
    %2012 = vmatpush.bf16.msra.mxu0 %v1967
    %2013 = vmatpush.bf16.msra.mxu0 %v1966
    %2014 = vmatpush.bf16.msra.mxu0 %v1965
    %2015 = vmatpush.bf16.msra.mxu0 %v1964
    %2016 = vmatpush.bf16.msra.mxu0 %v1963
    %2017 = vmatpush.bf16.msra.mxu0 %v1962
    %2018 = vmatmul.bf16.gmra.mxu0 %v178
    %v2019 = vpop.f32.mrf.mxu0
    %v2020 = vadd.f32 %v1680, %v2019
    %v2021 = vpop.f32.mrf.mxu0
    %v2022 = vadd.f32 %v1682, %v2021
    %2023 = vmatmul.bf16.gmra.mxu0 %v179
    %v2024 = vpop.f32.mrf.mxu0
    %v2025 = vadd.f32 %v1685, %v2024
    %v2026 = vpop.f32.mrf.mxu0
    %v2027 = vadd.f32 %v1687, %v2026
    %2028 = vmatmul.bf16.gmra.mxu0 %v180
    %v2029 = vpop.f32.mrf.mxu0
    %v2030 = vadd.f32 %v1690, %v2029
    %v2031 = vpop.f32.mrf.mxu0
    %v2032 = vadd.f32 %v1692, %v2031
    %2033 = vmatmul.bf16.gmra.mxu0 %v181
    %v2034 = vpop.f32.mrf.mxu0
    %v2035 = vadd.f32 %v1695, %v2034
    %v2036 = vpop.f32.mrf.mxu0
    %v2037 = vadd.f32 %v1697, %v2036
    %2038 = vmatmul.bf16.gmra.mxu0 %v380
    %v2039 = vpop.f32.mrf.mxu0
    %v2040 = vadd.f32 %v1700, %v2039
    %v2041 = vpop.f32.mrf.mxu0
    %v2042 = vadd.f32 %v1702, %v2041
    %2043 = vmatmul.bf16.gmra.mxu0 %v381
    %v2044 = vpop.f32.mrf.mxu0
    %v2045 = vadd.f32 %v1705, %v2044
    %v2046 = vpop.f32.mrf.mxu0
    %v2047 = vadd.f32 %v1707, %v2046
    %2048 = vmatmul.bf16.gmra.mxu0 %v382
    %v2049 = vpop.f32.mrf.mxu0
    %v2050 = vadd.f32 %v1710, %v2049
    %v2051 = vpop.f32.mrf.mxu0
    %v2052 = vadd.f32 %v1712, %v2051
    %2053 = vmatmul.bf16.gmra.mxu0 %v383
    %v2054 = vpop.f32.mrf.mxu0
    %v2055 = vadd.f32 %v1715, %v2054
    %v2056 = vpop.f32.mrf.mxu0
    %v2057 = vadd.f32 %v1717, %v2056
    %2058 = vdwg.mxu0
    %2059 = vmatpush.bf16.msra.mxu0 %v1977
    %2060 = vmatpush.bf16.msra.mxu0 %v1976
    %2061 = vmatpush.bf16.msra.mxu0 %v1975
    %2062 = vmatpush.bf16.msra.mxu0 %v1974
    %2063 = vmatpush.bf16.msra.mxu0 %v1973
    %2064 = vmatpush.bf16.msra.mxu0 %v1972
    %2065 = vmatpush.bf16.msra.mxu0 %v1971
    %2066 = vmatpush.bf16.msra.mxu0 %v1970
    %2067 = vmatmul.bf16.gmra.mxu0 %v202
    %v2068 = vpop.f32.mrf.mxu0
    %v2069 = vadd.f32 %v2020, %v2068
    %v2070 = vpop.f32.mrf.mxu0
    %v2071 = vadd.f32 %v2022, %v2070
    %2072 = vmatmul.bf16.gmra.mxu0 %v203
    %v2073 = vpop.f32.mrf.mxu0
    %v2074 = vadd.f32 %v2025, %v2073
    %v2075 = vpop.f32.mrf.mxu0
    %v2076 = vadd.f32 %v2027, %v2075
    %2077 = vmatmul.bf16.gmra.mxu0 %v204
    %v2078 = vpop.f32.mrf.mxu0
    %v2079 = vadd.f32 %v2030, %v2078
    %v2080 = vpop.f32.mrf.mxu0
    %v2081 = vadd.f32 %v2032, %v2080
    %2082 = vmatmul.bf16.gmra.mxu0 %v205
    %v2083 = vpop.f32.mrf.mxu0
    %v2084 = vadd.f32 %v2035, %v2083
    %v2085 = vpop.f32.mrf.mxu0
    %v2086 = vadd.f32 %v2037, %v2085
    %2087 = vmatmul.bf16.gmra.mxu0 %v404
    %v2088 = vpop.f32.mrf.mxu0
    %v2089 = vadd.f32 %v2040, %v2088
    %v2090 = vpop.f32.mrf.mxu0
    %v2091 = vadd.f32 %v2042, %v2090
    %2092 = vmatmul.bf16.gmra.mxu0 %v405
    %v2093 = vpop.f32.mrf.mxu0
    %v2094 = vadd.f32 %v2045, %v2093
    %v2095 = vpop.f32.mrf.mxu0
    %v2096 = vadd.f32 %v2047, %v2095
    %2097 = vmatmul.bf16.gmra.mxu0 %v406
    %v2098 = vpop.f32.mrf.mxu0
    %v2099 = vadd.f32 %v2050, %v2098
    %v2100 = vpop.f32.mrf.mxu0
    %v2101 = vadd.f32 %v2052, %v2100
    %2102 = vmatmul.bf16.gmra.mxu0 %v407
    %v2103 = vpop.f32.mrf.mxu0
    %v2104 = vadd.f32 %v2055, %v2103
    %v2105 = vpop.f32.mrf.mxu0
    %v2106 = vadd.f32 %v2057, %v2105
    %2107 = vdwg.mxu0
    %2108 = vmatpush.bf16.msra.mxu0 %v1985
    %2109 = vmatpush.bf16.msra.mxu0 %v1984
    %2110 = vmatpush.bf16.msra.mxu0 %v1983
    %2111 = vmatpush.bf16.msra.mxu0 %v1982
    %2112 = vmatpush.bf16.msra.mxu0 %v1981
    %2113 = vmatpush.bf16.msra.mxu0 %v1980
    %2114 = vmatpush.bf16.msra.mxu0 %v1979
    %2115 = vmatpush.bf16.msra.mxu0 %v1978
    %2116 = vmatmul.bf16.gmra.mxu0 %v218
    %v2117 = vpop.f32.mrf.mxu0
    %v2118 = vadd.f32 %v2069, %v2117
    %v2119 = vpop.f32.mrf.mxu0
    %v2120 = vadd.f32 %v2071, %v2119
    %2121 = vmatmul.bf16.gmra.mxu0 %v219
    %v2122 = vpop.f32.mrf.mxu0
    %v2123 = vadd.f32 %v2074, %v2122
    %v2124 = vpop.f32.mrf.mxu0
    %v2125 = vadd.f32 %v2076, %v2124
    %2126 = vmatmul.bf16.gmra.mxu0 %v220
    %v2127 = vpop.f32.mrf.mxu0
    %v2128 = vadd.f32 %v2079, %v2127
    %v2129 = vpop.f32.mrf.mxu0
    %v2130 = vadd.f32 %v2081, %v2129
    %2131 = vmatmul.bf16.gmra.mxu0 %v221
    %v2132 = vpop.f32.mrf.mxu0
    %v2133 = vadd.f32 %v2084, %v2132
    %v2134 = vpop.f32.mrf.mxu0
    %v2135 = vadd.f32 %v2086, %v2134
    %2136 = vmatmul.bf16.gmra.mxu0 %v420
    %v2137 = vpop.f32.mrf.mxu0
    %v2138 = vadd.f32 %v2089, %v2137
    %v2139 = vpop.f32.mrf.mxu0
    %v2140 = vadd.f32 %v2091, %v2139
    %2141 = vmatmul.bf16.gmra.mxu0 %v421
    %v2142 = vpop.f32.mrf.mxu0
    %v2143 = vadd.f32 %v2094, %v2142
    %v2144 = vpop.f32.mrf.mxu0
    %v2145 = vadd.f32 %v2096, %v2144
    %2146 = vmatmul.bf16.gmra.mxu0 %v422
    %v2147 = vpop.f32.mrf.mxu0
    %v2148 = vadd.f32 %v2099, %v2147
    %v2149 = vpop.f32.mrf.mxu0
    %v2150 = vadd.f32 %v2101, %v2149
    %2151 = vmatmul.bf16.gmra.mxu0 %v423
    %v2152 = vpop.f32.mrf.mxu0
    %v2153 = vadd.f32 %v2104, %v2152
    %v2154 = vpop.f32.mrf.mxu0
    %v2155 = vadd.f32 %v2106, %v2154
    %2156 = vdwg.mxu0
    %v2157 = vld [vmem:[%s3] sm:$0xf]
    %v2158 = vld [vmem:[%s3 + $0x4] sm:$0xf]
    %v2159 = vld [vmem:[%s3 + $0x8] sm:$0xf]
    %v2160 = vld [vmem:[%s3 + $0xc] sm:$0xf]
    %v2161 = vld [vmem:[%s3 + $0x10] sm:$0xf]
    %v2162 = vld [vmem:[%s3 + $0x14] sm:$0xf]
    %v2163 = vld [vmem:[%s3 + $0x18] sm:$0xf]
    %v2164 = vld [vmem:[%s3 + $0x1c] sm:$0xf]
    %v2165 = vld [vmem:[%s3 + $0x20] sm:$0xf]
    %v2166 = vld [vmem:[%s3 + $0x24] sm:$0xf]
    %v2167 = vld [vmem:[%s3 + $0x28] sm:$0xf]
    %v2168 = vld [vmem:[%s3 + $0x2c] sm:$0xf]
    %v2169 = vld [vmem:[%s3 + $0x30] sm:$0xf]
    %v2170 = vld [vmem:[%s3 + $0x34] sm:$0xf]
    %v2171 = vld [vmem:[%s3 + $0x38] sm:$0xf]
    %v2172 = vld [vmem:[%s3 + $0x3c] sm:$0xf]
    %v2173 = vld [vmem:[%s3 + $0x40] sm:$0xf]
    %v2174 = vld [vmem:[%s3 + $0x44] sm:$0xf]
    %v2175 = vld [vmem:[%s3 + $0x48] sm:$0xf]
    %v2176 = vld [vmem:[%s3 + $0x4c] sm:$0xf]
    %v2177 = vld [vmem:[%s3 + $0x50] sm:$0xf]
    %v2178 = vld [vmem:[%s3 + $0x54] sm:$0xf]
    %v2179 = vld [vmem:[%s3 + $0x58] sm:$0xf]
    %v2180 = vld [vmem:[%s3 + $0x5c] sm:$0xf]
    %v2181 = vld [vmem:[%s3 + $0x60] sm:$0xf]
    %v2182 = vld [vmem:[%s3 + $0x64] sm:$0xf]
    %v2183 = vld [vmem:[%s3 + $0x68] sm:$0xf]
    %v2184 = vld [vmem:[%s3 + $0x6c] sm:$0xf]
    %v2185 = vld [vmem:[%s3 + $0x70] sm:$0xf]
    %v2186 = vld [vmem:[%s3 + $0x74] sm:$0xf]
    %v2187 = vld [vmem:[%s3 + $0x78] sm:$0xf]
    %v2188 = vld [vmem:[%s3 + $0x7c] sm:$0xf]
    %v2189 = vld [vmem:[%s3 + $0x80] sm:$0xf]
    %v2190 = vld [vmem:[%s3 + $0x84] sm:$0xf]
    %v2191 = vld [vmem:[%s3 + $0x88] sm:$0xf]
    %v2192 = vld [vmem:[%s3 + $0x8c] sm:$0xf]
    %v2193 = vld [vmem:[%s3 + $0x90] sm:$0xf]
    %v2194 = vld [vmem:[%s3 + $0x94] sm:$0xf]
    %v2195 = vld [vmem:[%s3 + $0x98] sm:$0xf]
    %v2196 = vld [vmem:[%s3 + $0x9c] sm:$0xf]
    %v2197 = vld [vmem:[%s3 + $0xa0] sm:$0xf]
    %v2198 = vld [vmem:[%s3 + $0xa4] sm:$0xf]
    %v2199 = vld [vmem:[%s3 + $0xa8] sm:$0xf]
    %v2200 = vld [vmem:[%s3 + $0xac] sm:$0xf]
    %v2201 = vld [vmem:[%s3 + $0xb0] sm:$0xf]
    %v2202 = vld [vmem:[%s3 + $0xb4] sm:$0xf]
    %v2203 = vld [vmem:[%s3 + $0xb8] sm:$0xf]
    %v2204 = vld [vmem:[%s3 + $0xbc] sm:$0xf]
    %v2253 = vunpack.c.l.b16 %v2157
    %v2254 = vunpack.c.l.b16 %v2158
    %v2255 = vunpack.c.l.b16 %v2159
    %v2256 = vunpack.c.l.b16 %v2160
    %v2257 = vunpack.c.l.b16 %v2161
    %v2258 = vunpack.c.l.b16 %v2162
    %v2259 = vunpack.c.l.b16 %v2163
    %v2260 = vunpack.c.l.b16 %v2164
    %v2261 = vunpack.c.l.b16 %v2165
    %v2262 = vunpack.c.l.b16 %v2166
    %v2263 = vunpack.c.l.b16 %v2167
    %v2264 = vunpack.c.l.b16 %v2168
    %v2265 = vunpack.c.l.b16 %v2169
    %v2266 = vunpack.c.l.b16 %v2170
    %v2267 = vunpack.c.l.b16 %v2171
    %v2268 = vunpack.c.l.b16 %v2172
    %v2269 = vunpack.c.l.b16 %v2173
    %v2270 = vunpack.c.l.b16 %v2174
    %v2271 = vunpack.c.l.b16 %v2175
    %v2272 = vunpack.c.l.b16 %v2176
    %v2273 = vunpack.c.l.b16 %v2177
    %v2274 = vunpack.c.l.b16 %v2178
    %v2275 = vunpack.c.l.b16 %v2179
    %v2276 = vunpack.c.l.b16 %v2180
    %v2277 = vunpack.c.l.b16 %v2181
    %v2278 = vunpack.c.l.b16 %v2182
    %v2279 = vunpack.c.l.b16 %v2183
    %v2280 = vunpack.c.l.b16 %v2184
    %v2281 = vunpack.c.l.b16 %v2185
    %v2282 = vunpack.c.l.b16 %v2186
    %v2283 = vunpack.c.l.b16 %v2187
    %v2284 = vunpack.c.l.b16 %v2188
    %v2285 = vunpack.c.l.b16 %v2189
    %v2286 = vunpack.c.l.b16 %v2190
    %v2287 = vunpack.c.l.b16 %v2191
    %v2288 = vunpack.c.l.b16 %v2192
    %v2289 = vunpack.c.l.b16 %v2193
    %v2290 = vunpack.c.l.b16 %v2194
    %v2291 = vunpack.c.l.b16 %v2195
    %v2292 = vunpack.c.l.b16 %v2196
    %v2293 = vunpack.c.l.b16 %v2197
    %v2294 = vunpack.c.l.b16 %v2198
    %v2295 = vunpack.c.l.b16 %v2199
    %v2296 = vunpack.c.l.b16 %v2200
    %v2297 = vunpack.c.l.b16 %v2201
    %v2298 = vunpack.c.l.b16 %v2202
    %v2299 = vunpack.c.l.b16 %v2203
    %v2300 = vunpack.c.l.b16 %v2204
    %v2301 = vpack.c.b16 %v2254, %v2253
    %v2302 = vpack.c.b16 %v2256, %v2255
    %v2303 = vpack.c.b16 %v2258, %v2257
    %v2304 = vpack.c.b16 %v2260, %v2259
    %v2305 = vpack.c.b16 %v2262, %v2261
    %v2306 = vpack.c.b16 %v2264, %v2263
    %v2307 = vpack.c.b16 %v2266, %v2265
    %v2308 = vpack.c.b16 %v2268, %v2267
    %v2309 = vpack.c.b16 %v2270, %v2269
    %v2310 = vpack.c.b16 %v2272, %v2271
    %v2311 = vpack.c.b16 %v2274, %v2273
    %v2312 = vpack.c.b16 %v2276, %v2275
    %v2313 = vpack.c.b16 %v2278, %v2277
    %v2314 = vpack.c.b16 %v2280, %v2279
    %v2315 = vpack.c.b16 %v2282, %v2281
    %v2316 = vpack.c.b16 %v2284, %v2283
    %v2317 = vpack.c.b16 %v2286, %v2285
    %v2318 = vpack.c.b16 %v2288, %v2287
    %v2319 = vpack.c.b16 %v2290, %v2289
    %v2320 = vpack.c.b16 %v2292, %v2291
    %v2321 = vpack.c.b16 %v2294, %v2293
    %v2322 = vpack.c.b16 %v2296, %v2295
    %v2323 = vpack.c.b16 %v2298, %v2297
    %v2324 = vpack.c.b16 %v2300, %v2299
    %2349 = vmatpush.bf16.msra.mxu0 %v2308
    %2350 = vmatpush.bf16.msra.mxu0 %v2307
    %2351 = vmatpush.bf16.msra.mxu0 %v2306
    %2352 = vmatpush.bf16.msra.mxu0 %v2305
    %2353 = vmatpush.bf16.msra.mxu0 %v2304
    %2354 = vmatpush.bf16.msra.mxu0 %v2303
    %2355 = vmatpush.bf16.msra.mxu0 %v2302
    %2356 = vmatpush.bf16.msra.mxu0 %v2301
    %2357 = vmatmul.bf16.gmra.mxu0 %v986
    %v2358 = vpop.f32.mrf.mxu0
    %v2359 = vadd.f32 0.0, %v2358
    %v2360 = vpop.f32.mrf.mxu0
    %v2361 = vadd.f32 0.0, %v2360
    %2362 = vmatmul.bf16.gmra.mxu0 %v987
    %v2363 = vpop.f32.mrf.mxu0
    %v2364 = vadd.f32 0.0, %v2363
    %v2365 = vpop.f32.mrf.mxu0
    %v2366 = vadd.f32 0.0, %v2365
    %2367 = vmatmul.bf16.gmra.mxu0 %v988
    %v2368 = vpop.f32.mrf.mxu0
    %v2369 = vadd.f32 0.0, %v2368
    %v2370 = vpop.f32.mrf.mxu0
    %v2371 = vadd.f32 0.0, %v2370
    %2372 = vmatmul.bf16.gmra.mxu0 %v989
    %v2373 = vpop.f32.mrf.mxu0
    %v2374 = vadd.f32 0.0, %v2373
    %v2375 = vpop.f32.mrf.mxu0
    %v2376 = vadd.f32 0.0, %v2375
    %2377 = vmatmul.bf16.gmra.mxu0 %v1188
    %v2378 = vpop.f32.mrf.mxu0
    %v2379 = vadd.f32 0.0, %v2378
    %v2380 = vpop.f32.mrf.mxu0
    %v2381 = vadd.f32 0.0, %v2380
    %2382 = vmatmul.bf16.gmra.mxu0 %v1189
    %v2383 = vpop.f32.mrf.mxu0
    %v2384 = vadd.f32 0.0, %v2383
    %v2385 = vpop.f32.mrf.mxu0
    %v2386 = vadd.f32 0.0, %v2385
    %2387 = vmatmul.bf16.gmra.mxu0 %v1190
    %v2388 = vpop.f32.mrf.mxu0
    %v2389 = vadd.f32 0.0, %v2388
    %v2390 = vpop.f32.mrf.mxu0
    %v2391 = vadd.f32 0.0, %v2390
    %2392 = vmatmul.bf16.gmra.mxu0 %v1191
    %v2393 = vpop.f32.mrf.mxu0
    %v2394 = vadd.f32 0.0, %v2393
    %v2395 = vpop.f32.mrf.mxu0
    %v2396 = vadd.f32 0.0, %v2395
    %2397 = vdwg.mxu0
    %2398 = vmatpush.bf16.msra.mxu0 %v2316
    %2399 = vmatpush.bf16.msra.mxu0 %v2315
    %2400 = vmatpush.bf16.msra.mxu0 %v2314
    %2401 = vmatpush.bf16.msra.mxu0 %v2313
    %2402 = vmatpush.bf16.msra.mxu0 %v2312
    %2403 = vmatpush.bf16.msra.mxu0 %v2311
    %2404 = vmatpush.bf16.msra.mxu0 %v2310
    %2405 = vmatpush.bf16.msra.mxu0 %v2309
    %2406 = vmatmul.bf16.gmra.mxu0 %v1010
    %v2407 = vpop.f32.mrf.mxu0
    %v2408 = vadd.f32 %v2359, %v2407
    %v2409 = vpop.f32.mrf.mxu0
    %v2410 = vadd.f32 %v2361, %v2409
    %2411 = vmatmul.bf16.gmra.mxu0 %v1011
    %v2412 = vpop.f32.mrf.mxu0
    %v2413 = vadd.f32 %v2364, %v2412
    %v2414 = vpop.f32.mrf.mxu0
    %v2415 = vadd.f32 %v2366, %v2414
    %2416 = vmatmul.bf16.gmra.mxu0 %v1012
    %v2417 = vpop.f32.mrf.mxu0
    %v2418 = vadd.f32 %v2369, %v2417
    %v2419 = vpop.f32.mrf.mxu0
    %v2420 = vadd.f32 %v2371, %v2419
    %2421 = vmatmul.bf16.gmra.mxu0 %v1013
    %v2422 = vpop.f32.mrf.mxu0
    %v2423 = vadd.f32 %v2374, %v2422
    %v2424 = vpop.f32.mrf.mxu0
    %v2425 = vadd.f32 %v2376, %v2424
    %2426 = vmatmul.bf16.gmra.mxu0 %v1212
    %v2427 = vpop.f32.mrf.mxu0
    %v2428 = vadd.f32 %v2379, %v2427
    %v2429 = vpop.f32.mrf.mxu0
    %v2430 = vadd.f32 %v2381, %v2429
    %2431 = vmatmul.bf16.gmra.mxu0 %v1213
    %v2432 = vpop.f32.mrf.mxu0
    %v2433 = vadd.f32 %v2384, %v2432
    %v2434 = vpop.f32.mrf.mxu0
    %v2435 = vadd.f32 %v2386, %v2434
    %2436 = vmatmul.bf16.gmra.mxu0 %v1214
    %v2437 = vpop.f32.mrf.mxu0
    %v2438 = vadd.f32 %v2389, %v2437
    %v2439 = vpop.f32.mrf.mxu0
    %v2440 = vadd.f32 %v2391, %v2439
    %2441 = vmatmul.bf16.gmra.mxu0 %v1215
    %v2442 = vpop.f32.mrf.mxu0
    %v2443 = vadd.f32 %v2394, %v2442
    %v2444 = vpop.f32.mrf.mxu0
    %v2445 = vadd.f32 %v2396, %v2444
    %2446 = vdwg.mxu0
    %2447 = vmatpush.bf16.msra.mxu0 %v2324
    %2448 = vmatpush.bf16.msra.mxu0 %v2323
    %2449 = vmatpush.bf16.msra.mxu0 %v2322
    %2450 = vmatpush.bf16.msra.mxu0 %v2321
    %2451 = vmatpush.bf16.msra.mxu0 %v2320
    %2452 = vmatpush.bf16.msra.mxu0 %v2319
    %2453 = vmatpush.bf16.msra.mxu0 %v2318
    %2454 = vmatpush.bf16.msra.mxu0 %v2317
    %2455 = vmatmul.bf16.gmra.mxu0 %v1026
    %v2456 = vpop.f32.mrf.mxu0
    %v2457 = vadd.f32 %v2408, %v2456
    %v2458 = vpop.f32.mrf.mxu0
    %v2459 = vadd.f32 %v2410, %v2458
    %2460 = vmatmul.bf16.gmra.mxu0 %v1027
    %v2461 = vpop.f32.mrf.mxu0
    %v2462 = vadd.f32 %v2413, %v2461
    %v2463 = vpop.f32.mrf.mxu0
    %v2464 = vadd.f32 %v2415, %v2463
    %2465 = vmatmul.bf16.gmra.mxu0 %v1028
    %v2466 = vpop.f32.mrf.mxu0
    %v2467 = vadd.f32 %v2418, %v2466
    %v2468 = vpop.f32.mrf.mxu0
    %v2469 = vadd.f32 %v2420, %v2468
    %2470 = vmatmul.bf16.gmra.mxu0 %v1029
    %v2471 = vpop.f32.mrf.mxu0
    %v2472 = vadd.f32 %v2423, %v2471
    %v2473 = vpop.f32.mrf.mxu0
    %v2474 = vadd.f32 %v2425, %v2473
    %2475 = vmatmul.bf16.gmra.mxu0 %v1228
    %v2476 = vpop.f32.mrf.mxu0
    %v2477 = vadd.f32 %v2428, %v2476
    %v2478 = vpop.f32.mrf.mxu0
    %v2479 = vadd.f32 %v2430, %v2478
    %2480 = vmatmul.bf16.gmra.mxu0 %v1229
    %v2481 = vpop.f32.mrf.mxu0
    %v2482 = vadd.f32 %v2433, %v2481
    %v2483 = vpop.f32.mrf.mxu0
    %v2484 = vadd.f32 %v2435, %v2483
    %2485 = vmatmul.bf16.gmra.mxu0 %v1230
    %v2486 = vpop.f32.mrf.mxu0
    %v2487 = vadd.f32 %v2438, %v2486
    %v2488 = vpop.f32.mrf.mxu0
    %v2489 = vadd.f32 %v2440, %v2488
    %2490 = vmatmul.bf16.gmra.mxu0 %v1231
    %v2491 = vpop.f32.mrf.mxu0
    %v2492 = vadd.f32 %v2443, %v2491
    %v2493 = vpop.f32.mrf.mxu0
    %v2494 = vadd.f32 %v2445, %v2493
    %2495 = vdwg.mxu0
    %v2496 = vadd.f32 %v2118, %v2457
    %v2497 = vadd.f32 %v2120, %v2459
    %v2498 = vadd.f32 %v2123, %v2462
    %v2499 = vadd.f32 %v2125, %v2464
    %v2500 = vadd.f32 %v2128, %v2467
    %v2501 = vadd.f32 %v2130, %v2469
    %v2502 = vadd.f32 %v2133, %v2472
    %v2503 = vadd.f32 %v2135, %v2474
    %v2504 = vadd.f32 %v2138, %v2477
    %v2505 = vadd.f32 %v2140, %v2479
    %v2506 = vadd.f32 %v2143, %v2482
    %v2507 = vadd.f32 %v2145, %v2484
    %v2508 = vadd.f32 %v2148, %v2487
    %v2509 = vadd.f32 %v2150, %v2489
    %v2510 = vadd.f32 %v2153, %v2492
    %v2511 = vadd.f32 %v2155, %v2494
    %v2512 = vpack.c.bf16 %v2496, %v2496
    %v2513 = vpack.c.bf16 %v2497, %v2497
    %v2514 = vpack.c.bf16 %v2498, %v2498
    %v2515 = vpack.c.bf16 %v2499, %v2499
    %v2516 = vpack.c.bf16 %v2500, %v2500
    %v2517 = vpack.c.bf16 %v2501, %v2501
    %v2518 = vpack.c.bf16 %v2502, %v2502
    %v2519 = vpack.c.bf16 %v2503, %v2503
    %v2520 = vpack.c.bf16 %v2504, %v2504
    %v2521 = vpack.c.bf16 %v2505, %v2505
    %v2522 = vpack.c.bf16 %v2506, %v2506
    %v2523 = vpack.c.bf16 %v2507, %v2507
    %v2524 = vpack.c.bf16 %v2508, %v2508
    %v2525 = vpack.c.bf16 %v2509, %v2509
    %v2526 = vpack.c.bf16 %v2510, %v2510
    %v2527 = vpack.c.bf16 %v2511, %v2511
    %2528 = vst [vmem:[#allocation2] sm:$0xf] %v2512
    %2529 = vst [vmem:[#allocation2 + $0x4] sm:$0xf] %v2513
    %2530 = vst [vmem:[#allocation2 + $0x8] sm:$0xf] %v2514
    %2531 = vst [vmem:[#allocation2 + $0xc] sm:$0xf] %v2515
    %2532 = vst [vmem:[#allocation2 + $0x10] sm:$0xf] %v2516
    %2533 = vst [vmem:[#allocation2 + $0x14] sm:$0xf] %v2517
    %2534 = vst [vmem:[#allocation2 + $0x18] sm:$0xf] %v2518
    %2535 = vst [vmem:[#allocation2 + $0x1c] sm:$0xf] %v2519
    %2536 = vst [vmem:[#allocation2 + $0x20] sm:$0xf] %v2520
    %2537 = vst [vmem:[#allocation2 + $0x24] sm:$0xf] %v2521
    %2538 = vst [vmem:[#allocation2 + $0x28] sm:$0xf] %v2522
    %2539 = vst [vmem:[#allocation2 + $0x2c] sm:$0xf] %v2523
    %2540 = vst [vmem:[#allocation2 + $0x30] sm:$0xf] %v2524
    %2541 = vst [vmem:[#allocation2 + $0x34] sm:$0xf] %v2525
    %2542 = vst [vmem:[#allocation2 + $0x38] sm:$0xf] %v2526
    %2543 = vst [vmem:[#allocation2 + $0x3c] sm:$0xf] %v2527
    %v2544 = vadd.f32 %v2496, %v2497
    %v2545 = vadd.f32 %v2544, %v2498
    %v2546 = vadd.f32 %v2545, %v2499
    %v2547 = vadd.f32 %v2546, %v2500
    %v2548 = vadd.f32 %v2547, %v2501
    %v2549 = vadd.f32 %v2548, %v2502
    %v2550 = vadd.f32 %v2549, %v2503
    %v2551 = vadd.f32 %v2550, %v2504
    %v2552 = vadd.f32 %v2551, %v2505
    %v2553 = vadd.f32 %v2552, %v2506
    %v2554 = vadd.f32 %v2553, %v2507
    %v2555 = vadd.f32 %v2554, %v2508
    %v2556 = vadd.f32 %v2555, %v2509
    %v2557 = vadd.f32 %v2556, %v2510
    %v2558 = vadd.f32 %v2557, %v2511
    %v2559 = vrot.slane %v2558, 4
    %v2560 = vadd.f32 %v2558, %v2559
    %v2561 = vrot.slane %v2560, 2
    %v2562 = vadd.f32 %v2560, %v2561
    %v2563 = vrot.slane %v2562, 1
    %v2564 = vadd.f32 %v2562, %v2563
    %v2565 = vmul.f32 %v2496, %v2496
    %v2566 = vmul.f32 %v2497, %v2497
    %v2567 = vmul.f32 %v2498, %v2498
    %v2568 = vmul.f32 %v2499, %v2499
    %v2569 = vmul.f32 %v2500, %v2500
    %v2570 = vmul.f32 %v2501, %v2501
    %v2571 = vmul.f32 %v2502, %v2502
    %v2572 = vmul.f32 %v2503, %v2503
    %v2573 = vmul.f32 %v2504, %v2504
    %v2574 = vmul.f32 %v2505, %v2505
    %v2575 = vmul.f32 %v2506, %v2506
    %v2576 = vmul.f32 %v2507, %v2507
    %v2577 = vmul.f32 %v2508, %v2508
    %v2578 = vmul.f32 %v2509, %v2509
    %v2579 = vmul.f32 %v2510, %v2510
    %v2580 = vmul.f32 %v2511, %v2511
    %v2581 = vadd.f32 %v2565, %v2566
    %v2582 = vadd.f32 %v2581, %v2567
    %v2583 = vadd.f32 %v2582, %v2568
    %v2584 = vadd.f32 %v2583, %v2569
    %v2585 = vadd.f32 %v2584, %v2570
    %v2586 = vadd.f32 %v2585, %v2571
    %v2587 = vadd.f32 %v2586, %v2572
    %v2588 = vadd.f32 %v2587, %v2573
    %v2589 = vadd.f32 %v2588, %v2574
    %v2590 = vadd.f32 %v2589, %v2575
    %v2591 = vadd.f32 %v2590, %v2576
    %v2592 = vadd.f32 %v2591, %v2577
    %v2593 = vadd.f32 %v2592, %v2578
    %v2594 = vadd.f32 %v2593, %v2579
    %v2595 = vadd.f32 %v2594, %v2580
    %v2596 = vrot.slane %v2595, 4
    %v2597 = vadd.f32 %v2595, %v2596
    %v2598 = vrot.slane %v2597, 2
    %v2599 = vadd.f32 %v2597, %v2598
    %v2600 = vrot.slane %v2599, 1
    %v2601 = vadd.f32 %v2599, %v2600
    %v2602 = vpack.c.bf16 %v1827, %v1827
    %v2603 = vpack.c.bf16 %v1829, %v1829
    %v2604 = vpack.c.bf16 %v1832, %v1832
    %v2605 = vpack.c.bf16 %v1834, %v1834
    %v2606 = vpack.c.bf16 %v1837, %v1837
    %v2607 = vpack.c.bf16 %v1839, %v1839
    %v2608 = vpack.c.bf16 %v1842, %v1842
    %v2609 = vpack.c.bf16 %v1844, %v1844
    %v2610 = vpack.c.bf16 %v1847, %v1847
    %v2611 = vpack.c.bf16 %v1849, %v1849
    %v2612 = vpack.c.bf16 %v1852, %v1852
    %v2613 = vpack.c.bf16 %v1854, %v1854
    %v2614 = vpack.c.bf16 %v1857, %v1857
    %v2615 = vpack.c.bf16 %v1859, %v1859
    %v2616 = vpack.c.bf16 %v1862, %v1862
    %v2617 = vpack.c.bf16 %v1864, %v1864
    %2618 = vst [vmem:[#allocation4] sm:$0xf] %v2602
    %2619 = vst [vmem:[#allocation4 + $0x4] sm:$0xf] %v2603
    %2620 = vst [vmem:[#allocation4 + $0x8] sm:$0xf] %v2604
    %2621 = vst [vmem:[#allocation4 + $0xc] sm:$0xf] %v2605
    %2622 = vst [vmem:[#allocation4 + $0x10] sm:$0xf] %v2606
    %2623 = vst [vmem:[#allocation4 + $0x14] sm:$0xf] %v2607
    %2624 = vst [vmem:[#allocation4 + $0x18] sm:$0xf] %v2608
    %2625 = vst [vmem:[#allocation4 + $0x1c] sm:$0xf] %v2609
    %2626 = vst [vmem:[#allocation4 + $0x20] sm:$0xf] %v2610
    %2627 = vst [vmem:[#allocation4 + $0x24] sm:$0xf] %v2611
    %2628 = vst [vmem:[#allocation4 + $0x28] sm:$0xf] %v2612
    %2629 = vst [vmem:[#allocation4 + $0x2c] sm:$0xf] %v2613
    %2630 = vst [vmem:[#allocation4 + $0x30] sm:$0xf] %v2614
    %2631 = vst [vmem:[#allocation4 + $0x34] sm:$0xf] %v2615
    %2632 = vst [vmem:[#allocation4 + $0x38] sm:$0xf] %v2616
    %2633 = vst [vmem:[#allocation4 + $0x3c] sm:$0xf] %v2617
    %v2634 = vadd.f32 %v1827, %v1829
    %v2635 = vadd.f32 %v2634, %v1832
    %v2636 = vadd.f32 %v2635, %v1834
    %v2637 = vadd.f32 %v2636, %v1837
    %v2638 = vadd.f32 %v2637, %v1839
    %v2639 = vadd.f32 %v2638, %v1842
    %v2640 = vadd.f32 %v2639, %v1844
    %v2641 = vadd.f32 %v2640, %v1847
    %v2642 = vadd.f32 %v2641, %v1849
    %v2643 = vadd.f32 %v2642, %v1852
    %v2644 = vadd.f32 %v2643, %v1854
    %v2645 = vadd.f32 %v2644, %v1857
    %v2646 = vadd.f32 %v2645, %v1859
    %v2647 = vadd.f32 %v2646, %v1862
    %v2648 = vadd.f32 %v2647, %v1864
    %v2649 = vrot.slane %v2648, 4
    %v2650 = vadd.f32 %v2648, %v2649
    %v2651 = vrot.slane %v2650, 2
    %v2652 = vadd.f32 %v2650, %v2651
    %v2653 = vrot.slane %v2652, 1
    %v2654 = vadd.f32 %v2652, %v2653
    %v2655 = vmul.f32 %v1827, %v1827
    %v2656 = vmul.f32 %v1829, %v1829
    %v2657 = vmul.f32 %v1832, %v1832
    %v2658 = vmul.f32 %v1834, %v1834
    %v2659 = vmul.f32 %v1837, %v1837
    %v2660 = vmul.f32 %v1839, %v1839
    %v2661 = vmul.f32 %v1842, %v1842
    %v2662 = vmul.f32 %v1844, %v1844
    %v2663 = vmul.f32 %v1847, %v1847
    %v2664 = vmul.f32 %v1849, %v1849
    %v2665 = vmul.f32 %v1852, %v1852
    %v2666 = vmul.f32 %v1854, %v1854
    %v2667 = vmul.f32 %v1857, %v1857
    %v2668 = vmul.f32 %v1859, %v1859
    %v2669 = vmul.f32 %v1862, %v1862
    %v2670 = vmul.f32 %v1864, %v1864
    %v2671 = vadd.f32 %v2655, %v2656
    %v2672 = vadd.f32 %v2671, %v2657
    %v2673 = vadd.f32 %v2672, %v2658
    %v2674 = vadd.f32 %v2673, %v2659
    %v2675 = vadd.f32 %v2674, %v2660
    %v2676 = vadd.f32 %v2675, %v2661
    %v2677 = vadd.f32 %v2676, %v2662
    %v2678 = vadd.f32 %v2677, %v2663
    %v2679 = vadd.f32 %v2678, %v2664
    %v2680 = vadd.f32 %v2679, %v2665
    %v2681 = vadd.f32 %v2680, %v2666
    %v2682 = vadd.f32 %v2681, %v2667
    %v2683 = vadd.f32 %v2682, %v2668
    %v2684 = vadd.f32 %v2683, %v2669
    %v2685 = vadd.f32 %v2684, %v2670
    %v2686 = vrot.slane %v2685, 4
    %v2687 = vadd.f32 %v2685, %v2686
    %v2688 = vrot.slane %v2687, 2
    %v2689 = vadd.f32 %v2687, %v2688
    %v2690 = vrot.slane %v2689, 1
    %v2691 = vadd.f32 %v2689, %v2690
    %vm2692 = vcmask 1040384
    %v2693 = vsel %vm2692, %v2564, %v2601
    %vm2694 = vcmask 1041408
    %v2695 = vsel %vm2694, %v2693, %v2654
    %vm2696 = vcmask 1042432
    %v2697 = vsel %vm2696, %v2695, %v2691
    %2698 = vst [vmem:[#allocation6] sm:$0xf] %v2697
    // Predicated region
    $region18: #{tpu_custom_call.1} parent=1 // pred_check
      _
    $region19: #{tpu_custom_call.1} parent=1 // pred_check_branch
      %2700 = sbr.rel (0) target = $region21
    $region20: #{tpu_custom_call.1} parent=1 // pred_region
      %2702 = vsyncadd [#allocation3], 0
      %s2703 = sshll.u32 [#allocation2], 4
      %s2704 = int_to_ptr.vmem [resolvable:$true] %s2703
      %s2705 = sshll.u32 %s4, 4
      %s2706 = int_to_ptr.hbm [resolvable:$true] %s2705
      %2711 = dma.vmem_to_hbm [thread:$0]  %s2704, 1024, %s2706, [#allocation3], 64, 64, 4
    $region21: #{tpu_custom_call.1} parent=1 // pred_fallthru
      _
    // Predicated region
    $region22: #{tpu_custom_call.1} parent=1 // pred_check
      _
    $region23: #{tpu_custom_call.1} parent=1 // pred_check_branch
      %2713 = sbr.rel (0) target = $region25
    $region24: #{tpu_custom_call.1} parent=1 // pred_region
      %2715 = vsyncadd [#allocation5], 0
      %s2716 = sshll.u32 [#allocation4], 4
      %s2717 = int_to_ptr.vmem [resolvable:$true] %s2716
      %s2718 = sshll.u32 %s5, 4
      %s2719 = int_to_ptr.hbm [resolvable:$true] %s2718
      %2724 = dma.vmem_to_hbm [thread:$0]  %s2717, 1024, %s2719, [#allocation5], 64, 64, 4
    $region25: #{tpu_custom_call.1} parent=1 // pred_fallthru
      _
    // Predicated region
    $region26: #{tpu_custom_call.1} parent=1 // pred_check
      _
    $region27: #{tpu_custom_call.1} parent=1 // pred_check_branch
      %2726 = sbr.rel (0) target = $region29
    $region28: #{tpu_custom_call.1} parent=1 // pred_region
      %2728 = vsyncadd [#allocation5], 0
      %s2730 = sshll.u32 [#allocation6], 4
      %s2731 = int_to_ptr.vmem [resolvable:$true] %s2730
      %s2732 = sshll.u32 %s6, 4
      %s2733 = int_to_ptr.hbm [resolvable:$true] %s2732
      %2735 = dma.vmem_to_hbm [thread:$0]  %s2731, 64, %s2733, [#allocation5]
    $region29: #{tpu_custom_call.1} parent=1 // pred_fallthru
      _
    // Predicated region
    $region30: #{tpu_custom_call.1} parent=1 // pred_check
      _
    $region31: #{tpu_custom_call.1} parent=1 // pred_check_branch
      %2737 = sbr.rel (0) target = $region33
    $region32: #{tpu_custom_call.1} parent=1 // pred_region
      %2739 = dma.done [#allocation3], 1024
    $region33: #{tpu_custom_call.1} parent=1 // pred_fallthru
      _
    // Predicated region
    $region34: #{tpu_custom_call.1} parent=1 // pred_check
      _
    $region35: #{tpu_custom_call.1} parent=1 // pred_check_branch
      %2741 = sbr.rel (0) target = $region37
    $region36: #{tpu_custom_call.1} parent=1 // pred_region
      %2743 = dma.done [#allocation5], 1024
    $region37: #{tpu_custom_call.1} parent=1 // pred_fallthru
      _
    // Predicated region
    $region38: #{tpu_custom_call.1} parent=1 // pred_check
      _
    $region39: #{tpu_custom_call.1} parent=1 // pred_check_branch
      %2745 = sbr.rel (0) target = $region41
    $region40: #{tpu_custom_call.1} parent=1 // pred_region
      %2747 = dma.done [#allocation5], 64
    $region41: #{tpu_custom_call.1} parent=1 // pred_fallthru
      _
    %2748 = vsyncpa [#allocation3], 1
    %2749 = vsyncpa [#allocation5], 1

</llo_original>
